<compile_context>
chip_gen: v7x
topology: tpu7x:2x2x1
jax: 0.10.0
libtpu: 0.0.40
codegen_flags: <defaults>
</compile_context>

<pallas_src>
import functools
import math

import jax
import jax.numpy as jnp
from jax import lax
from jax.experimental import pallas as pl
from jax.experimental.pallas import tpu as pltpu

LANE = 128   # output-channel tile (lane-dense stores)
TM = 128     # max row tile for the plain matmul kernel


def _round_up(x, m):
    return ((x + m - 1) // m) * m


# ----------------------------------------------------------------------------
# Pallas kernel 1: full-K matmul + bias + optional activation epilogue.
# ----------------------------------------------------------------------------
def _mm_bias_act_kernel(a_ref, b_ref, bias_ref, o_ref, *, act, slope):
    y = jnp.dot(a_ref[...], b_ref[...], preferred_element_type=jnp.float32)
    y = y + bias_ref[...]
    if act == "leaky":
        y = jnp.where(y > 0, y, slope * y)
    elif act == "sigmoid":
        y = 1.0 / (1.0 + jnp.exp(-y))
    o_ref[...] = y.astype(o_ref.dtype)


def matmul_bias_act(A, B, bias, act="none", slope=0.2):
    """act?( A @ B + bias ) with bf16 operands and f32 accumulation."""
    M, K = A.shape
    _, N = B.shape
    tm = min(TM, _round_up(M, 8))   # adaptive row tile (avoid padding tiny M)
    Mp = _round_up(M, tm)
    Np = _round_up(N, LANE)
    Kp = _round_up(K, 16)           # bf16 sublane packing; single full-K block

    Ap = jnp.pad(A, ((0, Mp - M), (0, Kp - K)))
    Bp = jnp.pad(B, ((0, Kp - K), (0, Np - N)))
    bp = jnp.pad(bias.astype(jnp.float32), (0, Np - N)).reshape(1, Np)

    out = pl.pallas_call(
        functools.partial(_mm_bias_act_kernel, act=act, slope=slope),
        out_shape=jax.ShapeDtypeStruct((Mp, Np), jnp.float32),
        grid_spec=pltpu.PrefetchScalarGridSpec(
            num_scalar_prefetch=0,
            grid=(Mp // tm, Np // LANE),
            in_specs=[
                pl.BlockSpec((tm, Kp), lambda i, j: (i, 0)),
                pl.BlockSpec((Kp, LANE), lambda i, j: (0, j)),
                pl.BlockSpec((1, LANE), lambda i, j: (0, j)),
            ],
            out_specs=pl.BlockSpec((tm, LANE), lambda i, j: (i, j)),
        ),
        compiler_params=pltpu.CompilerParams(
            dimension_semantics=("parallel", "parallel")),
    )(Ap, Bp, bp)
    return out[:M, :N]


# ----------------------------------------------------------------------------
# Pallas kernel 2: per-sample full-K matmul + bias + InstanceNorm + LeakyReLU.
# One grid step per batch element; the spatial (H*W) reduction for the
# instance statistics stays inside the block (padded rows are masked out).
# ----------------------------------------------------------------------------
def _mm_bias_inorm_lrelu_kernel(a_ref, b_ref, bias_ref, o_ref, *,
                                n_valid, eps, slope):
    a = a_ref[0]                                                     # (Msp, Kp)
    y = jnp.dot(a, b_ref[...], preferred_element_type=jnp.float32)   # (Msp, Np)
    y = y + bias_ref[...]

    rows = lax.broadcasted_iota(jnp.int32, y.shape, 0)
    valid = rows < n_valid
    inv_n = 1.0 / float(n_valid)

    ym = jnp.where(valid, y, 0.0)
    mean = jnp.sum(ym, axis=0, keepdims=True) * inv_n
    diff = jnp.where(valid, y - mean, 0.0)
    var = jnp.sum(diff * diff, axis=0, keepdims=True) * inv_n         # biased
    yn = (y - mean) * lax.rsqrt(var + eps)

    o_ref[0] = jnp.where(yn > 0, yn, slope * yn).astype(o_ref.dtype)


def matmul_bias_inorm_lrelu(A, B, bias, eps=1e-5, slope=0.2):
    """Per-sample: LeakyReLU(InstanceNorm(A[b] @ B + bias)) for each b."""
    Nb, Ms, K = A.shape
    _, N = B.shape
    Msp = _round_up(Ms, 16)
    Np = _round_up(N, LANE)
    Kp = _round_up(K, 16)

    Ap = jnp.pad(A, ((0, 0), (0, Msp - Ms), (0, Kp - K)))
    Bp = jnp.pad(B, ((0, Kp - K), (0, Np - N)))
    bp = jnp.pad(bias.astype(jnp.float32), (0, Np - N)).reshape(1, Np)

    out = pl.pallas_call(
        functools.partial(_mm_bias_inorm_lrelu_kernel,
                          n_valid=Ms, eps=eps, slope=slope),
        out_shape=jax.ShapeDtypeStruct((Nb, Msp, Np), jnp.float32),
        grid_spec=pltpu.PrefetchScalarGridSpec(
            num_scalar_prefetch=0,
            grid=(Nb,),
            in_specs=[
                pl.BlockSpec((1, Msp, Kp), lambda b: (b, 0, 0)),
                pl.BlockSpec((Kp, Np), lambda b: (0, 0)),
                pl.BlockSpec((1, Np), lambda b: (0, 0)),
            ],
            out_specs=pl.BlockSpec((1, Msp, Np), lambda b: (b, 0, 0)),
        ),
        compiler_params=pltpu.CompilerParams(
            dimension_semantics=("parallel",)),
    )(Ap, Bp, bp)
    return out[:, :Ms, :N]


# ----------------------------------------------------------------------------
# Convolution wrappers (im2col glue is plain JAX; matmul runs in Pallas).
# For these tiny activation maps the im2col blow-up is negligible; an in-kernel
# shifted-window conv would only matter at much larger spatial sizes.
# ----------------------------------------------------------------------------
def _extract_patches(x, kh, kw, stride, pad):
    # x: NHWC. Returns (Nb, Ho, Wo, kh*kw*C) with (dy, dx, c) flattening order.
    if pad:
        x = jnp.pad(x, ((0, 0), (pad, pad), (pad, pad), (0, 0)))
    Nb, Hp, Wp, C = x.shape
    Ho = (Hp - kh) // stride + 1
    Wo = (Wp - kw) // stride + 1
    cols = []
    for dy in range(kh):
        for dx in range(kw):
            cols.append(lax.slice(
                x,
                (0, dy, dx, 0),
                (Nb, dy + (Ho - 1) * stride + 1, dx + (Wo - 1) * stride + 1, C),
                (1, stride, stride, 1)))
    patches = jnp.stack(cols, axis=3)            # (Nb, Ho, Wo, kh*kw, C)
    return patches.reshape(Nb, Ho, Wo, kh * kw * C), Ho, Wo


def _weight_to_matrix(w):
    # PyTorch (Cout, Cin, kh, kw) -> (kh*kw*Cin, Cout), matching (dy, dx, c).
    cout, cin, kh, kw = w.shape
    return jnp.transpose(w, (2, 3, 1, 0)).reshape(kh * kw * cin, cout)


def conv2d_act(x, w, b, stride=1, pad=0, act="none"):
    cout, cin, kh, kw = w.shape
    Nb = x.shape[0]
    A, Ho, Wo = _extract_patches(x.astype(jnp.bfloat16), kh, kw, stride, pad)
    A = A.reshape(Nb * Ho * Wo, kh * kw * cin)
    B = _weight_to_matrix(w).astype(jnp.bfloat16)
    if b is None:
        b = jnp.zeros((cout,), jnp.float32)
    Y = matmul_bias_act(A, B, b, act=act)
    return Y.reshape(Nb, Ho, Wo, cout)


def conv2d_inorm_lrelu(x, w, b, stride=1, pad=0):
    cout, cin, kh, kw = w.shape
    Nb = x.shape[0]
    A, Ho, Wo = _extract_patches(x.astype(jnp.bfloat16), kh, kw, stride, pad)
    A = A.reshape(Nb, Ho * Wo, kh * kw * cin)
    B = _weight_to_matrix(w).astype(jnp.bfloat16)
    Y = matmul_bias_inorm_lrelu(A, B, b)
    return Y.reshape(Nb, Ho, Wo, cout)


# ----------------------------------------------------------------------------
# Deterministic parameter init (matches PyTorch Conv2d default init scheme).
# ----------------------------------------------------------------------------
class KeyGen:
    def __init__(self, key):
        self.key = key

    def __call__(self):
        self.key, k = jax.random.split(self.key)
        return k


def init_conv(kg, cout, cin, kh, kw, bias=True):
    fan = cin * kh * kw
    bound = 1.0 / math.sqrt(fan)
    w = jax.random.uniform(kg(), (cout, cin, kh, kw), jnp.float32, -bound, bound)
    b = (jax.random.uniform(kg(), (cout,), jnp.float32, -bound, bound)
         if bias else None)
    return w, b


def init_dis(key, input_nc=1):
    kg = KeyGen(key)
    p = {}
    p['w1'], p['b1'] = init_conv(kg, 64, input_nc, 3, 3)   # Conv(in,64,3,s2)
    p['w2'], p['b2'] = init_conv(kg, 64, 64, 3, 3)         # Conv(64,64,3,s2)+IN
    p['w3'], p['b3'] = init_conv(kg, 64, 64, 3, 3)         # Conv(64,64,3,s2)+IN
    p['w4'], p['b4'] = init_conv(kg, 64, 64, 3, 3)         # Conv(64,64,3,p1)+IN
    p['w5'], _ = init_conv(kg, 1, 64, 1, 1, bias=False)    # Conv(64,1,1,no bias)
    return p


# ----------------------------------------------------------------------------
# Forward pass (matches Dis.forward: conv stack -> sigmoid).
# ----------------------------------------------------------------------------
def dis_forward(params, x_nchw):
    x = jnp.transpose(x_nchw, (0, 2, 3, 1))                     # NCHW -> NHWC
    x = conv2d_act(x, params['w1'], params['b1'], stride=2, pad=0, act="leaky")
    x = conv2d_inorm_lrelu(x, params['w2'], params['b2'], stride=2, pad=0)
    x = conv2d_inorm_lrelu(x, params['w3'], params['b3'], stride=2, pad=0)
    x = conv2d_inorm_lrelu(x, params['w4'], params['b4'], stride=1, pad=1)
    x = conv2d_act(x, params['w5'], None, stride=1, pad=0, act="sigmoid")
    return jnp.transpose(x, (0, 3, 1, 2))                       # NHWC -> NCHW


if __name__ == "__main__":
    key = jax.random.PRNGKey(0)
    k_param, k_input = jax.random.split(key)

    params = init_dis(k_param, input_nc=1)

    # Small grayscale input (Dis stem is Conv2d(1, 64, 3, stride=2)): (2,1,32,32)
    x = jax.random.normal(k_input, (2, 1, 32, 32), jnp.float32)

    fwd = jax.jit(dis_forward)
    out = jax.block_until_ready(fwd(params, x))

    # 32 -> 15 -> 7 -> 3 (three stride-2 valid convs), then same-size convs.
    assert out.shape == (2, 1, 3, 3), out.shape
    assert bool(jnp.all(jnp.isfinite(out)))
    assert bool(jnp.all((out >= 0.0) & (out <= 1.0)))
    print("KERNEL_OK")
</pallas_src>

<mosaic_0001>
module attributes {stable_mosaic.version = 11 : i64} {
  func.func @_mm_bias_act_kernel(%arg0: i32, %arg1: i32, %arg2: memref<128x16xbf16, #tpu.memory_space<vmem>>, %arg3: memref<16x128xbf16, #tpu.memory_space<vmem>>, %arg4: memref<1x128xf32, #tpu.memory_space<vmem>>, %arg5: memref<128x128xf32, #tpu.memory_space<vmem>>) attributes {dimension_semantics = [#tpu.dimension_semantics<parallel>, #tpu.dimension_semantics<parallel>], iteration_bounds = array<i64: 4, 1>, scalar_prefetch = 0 : i64, scratch_operands = 0 : i64, tpu.core_type = #tpu.core_type<tc>, window_params = [{transform_indices = @transform_0, window_bounds = array<i64: 128, 16>}, {transform_indices = @transform_1, window_bounds = array<i64: 16, 128>}, {transform_indices = @transform_2, window_bounds = array<i64: 1, 128>}, {transform_indices = @transform_3, window_bounds = array<i64: 128, 128>}]} {
    %c0 = arith.constant 0 : index
    %c0_0 = arith.constant 0 : index
    %0 = vector.load %arg2[%c0, %c0_0] : memref<128x16xbf16, #tpu.memory_space<vmem>>, vector<128x16xbf16>
    %c0_1 = arith.constant 0 : index
    %c0_2 = arith.constant 0 : index
    %1 = vector.load %arg3[%c0_1, %c0_2] : memref<16x128xbf16, #tpu.memory_space<vmem>>, vector<16x128xbf16>
    %cst = arith.constant dense<0.000000e+00> : vector<128x128xf32>
    %2 = tpu.matmul %0, %1, %cst {dimension_numbers = #tpu.dot_dimension_numbers<[1], [0], [0], [1], [0, 0, 1, 1], [], []>} : vector<128x16xbf16>, vector<16x128xbf16>, vector<128x128xf32> -> vector<128x128xf32>
    %c0_3 = arith.constant 0 : index
    %c0_4 = arith.constant 0 : index
    %3 = vector.load %arg4[%c0_3, %c0_4] : memref<1x128xf32, #tpu.memory_space<vmem>>, vector<1x128xf32>
    %4 = vector.broadcast %3 : vector<1x128xf32> to vector<128x128xf32>
    %5 = arith.addf %2, %4 : vector<128x128xf32>
    %cst_5 = arith.constant 0.000000e+00 : f32
    %6 = vector.broadcast %cst_5 : f32 to vector<128x128xf32>
    %7 = arith.cmpf ogt, %5, %6 : vector<128x128xf32>
    %cst_6 = arith.constant 2.000000e-01 : f32
    %8 = vector.broadcast %cst_6 : f32 to vector<128x128xf32>
    %9 = arith.mulf %8, %5 : vector<128x128xf32>
    %10 = arith.select %7, %5, %9 : vector<128x128xi1>, vector<128x128xf32>
    %c0_7 = arith.constant 0 : index
    %c0_8 = arith.constant 0 : index
    %11 = vector.load %arg5[%c0_7, %c0_8] : memref<128x128xf32, #tpu.memory_space<vmem>>, vector<128x128xf32>
    tpu.vector_store %arg5[%c0_7, %c0_8], %10 {strides = array<i32>} : memref<128x128xf32, #tpu.memory_space<vmem>>, vector<128x128xf32>,
    return
  }
  func.func @transform_0(%arg0: i32, %arg1: i32) -> (i32, i32) {
    %c0_i32 = arith.constant 0 : i32
    %c0_i32_0 = arith.constant 0 : i32
    return %arg0, %c0_i32 : i32, i32
  }
  func.func @transform_1(%arg0: i32, %arg1: i32) -> (i32, i32) {
    %c0_i32 = arith.constant 0 : i32
    %c0_i32_0 = arith.constant 0 : i32
    return %c0_i32, %arg1 : i32, i32
  }
  func.func @transform_2(%arg0: i32, %arg1: i32) -> (i32, i32) {
    %c0_i32 = arith.constant 0 : i32
    %c0_i32_0 = arith.constant 0 : i32
    return %c0_i32, %arg1 : i32, i32
  }
  func.func @transform_3(%arg0: i32, %arg1: i32) -> (i32, i32) {
    %c0_i32 = arith.constant 0 : i32
    return %arg0, %arg1 : i32, i32
  }
}

module attributes {stable_mosaic.version = 11 : i64} {
  func.func @_mm_bias_inorm_lrelu_kernel(%arg0: i32, %arg1: memref<1x64x576xbf16, #tpu.memory_space<vmem>>, %arg2: memref<576x128xbf16, #tpu.memory_space<vmem>>, %arg3: memref<1x128xf32, #tpu.memory_space<vmem>>, %arg4: memref<1x64x128xf32, #tpu.memory_space<vmem>>) attributes {dimension_semantics = [#tpu.dimension_semantics<parallel>], iteration_bounds = array<i64: 2>, scalar_prefetch = 0 : i64, scratch_operands = 0 : i64, tpu.core_type = #tpu.core_type<tc>, window_params = [{transform_indices = @transform_0, window_bounds = array<i64: 1, 64, 576>}, {pipeline_mode = #tpu.pipeline_mode<synchronous>, transform_indices = @transform_1, window_bounds = array<i64: 576, 128>}, {pipeline_mode = #tpu.pipeline_mode<synchronous>, transform_indices = @transform_2, window_bounds = array<i64: 1, 128>}, {transform_indices = @transform_3, window_bounds = array<i64: 1, 64, 128>}]} {
    %c0 = arith.constant 0 : index
    %c0_0 = arith.constant 0 : index
    %c0_1 = arith.constant 0 : index
    %0 = vector.load %arg1[%c0, %c0_0, %c0_1] : memref<1x64x576xbf16, #tpu.memory_space<vmem>>, vector<1x64x576xbf16>
    %1 = vector.shape_cast %0 : vector<1x64x576xbf16> to vector<64x576xbf16>
    %c0_2 = arith.constant 0 : index
    %c0_3 = arith.constant 0 : index
    %2 = vector.load %arg2[%c0_2, %c0_3] : memref<576x128xbf16, #tpu.memory_space<vmem>>, vector<576x128xbf16>
    %cst = arith.constant dense<0.000000e+00> : vector<64x128xf32>
    %3 = tpu.matmul %1, %2, %cst {dimension_numbers = #tpu.dot_dimension_numbers<[1], [0], [0], [1], [0, 0, 1, 1], [], []>} : vector<64x576xbf16>, vector<576x128xbf16>, vector<64x128xf32> -> vector<64x128xf32>
    %c0_4 = arith.constant 0 : index
    %c0_5 = arith.constant 0 : index
    %4 = vector.load %arg3[%c0_4, %c0_5] : memref<1x128xf32, #tpu.memory_space<vmem>>, vector<1x128xf32>
    %5 = vector.broadcast %4 : vector<1x128xf32> to vector<64x128xf32>
    %6 = arith.addf %3, %5 : vector<64x128xf32>
    %7 = tpu.iota {dimensions = array<i32: 0>} : vector<64x128xi32>
    %c49_i32 = arith.constant 49 : i32
    %8 = vector.broadcast %c49_i32 : i32 to vector<64x128xi32>
    %9 = arith.cmpi slt, %7, %8 : vector<64x128xi32>
    %cst_6 = arith.constant 0.000000e+00 : f32
    %10 = vector.broadcast %cst_6 : f32 to vector<64x128xf32>
    %11 = arith.select %9, %6, %10 : vector<64x128xi1>, vector<64x128xf32>
    %cst_7 = arith.constant dense<0.000000e+00> : vector<128xf32>
    %12 = vector.multi_reduction <add>, %11, %cst_7 [0] : vector<64x128xf32> to vector<128xf32>
    %13 = vector.shape_cast %12 : vector<128xf32> to vector<1x128xf32>
    %cst_8 = arith.constant 0.0204081628 : f32
    %14 = vector.broadcast %cst_8 : f32 to vector<1x128xf32>
    %15 = arith.mulf %13, %14 : vector<1x128xf32>
    %16 = vector.broadcast %15 : vector<1x128xf32> to vector<64x128xf32>
    %17 = arith.subf %6, %16 : vector<64x128xf32>
    %cst_9 = arith.constant 0.000000e+00 : f32
    %18 = vector.broadcast %cst_9 : f32 to vector<64x128xf32>
    %19 = arith.select %9, %17, %18 : vector<64x128xi1>, vector<64x128xf32>
    %20 = arith.mulf %19, %19 : vector<64x128xf32>
    %cst_10 = arith.constant dense<0.000000e+00> : vector<128xf32>
    %21 = vector.multi_reduction <add>, %20, %cst_10 [0] : vector<64x128xf32> to vector<128xf32>
    %22 = vector.shape_cast %21 : vector<128xf32> to vector<1x128xf32>
    %cst_11 = arith.constant 0.0204081628 : f32
    %23 = vector.broadcast %cst_11 : f32 to vector<1x128xf32>
    %24 = arith.mulf %22, %23 : vector<1x128xf32>
    %25 = vector.broadcast %15 : vector<1x128xf32> to vector<64x128xf32>
    %26 = arith.subf %6, %25 : vector<64x128xf32>
    %cst_12 = arith.constant 9.99999974E-6 : f32
    %27 = vector.broadcast %cst_12 : f32 to vector<1x128xf32>
    %28 = arith.addf %24, %27 : vector<1x128xf32>
    %29 = math.rsqrt %28 : vector<1x128xf32>
    %30 = vector.broadcast %29 : vector<1x128xf32> to vector<64x128xf32>
    %31 = arith.mulf %26, %30 : vector<64x128xf32>
    %cst_13 = arith.constant 0.000000e+00 : f32
    %32 = vector.broadcast %cst_13 : f32 to vector<64x128xf32>
    %33 = arith.cmpf ogt, %31, %32 : vector<64x128xf32>
    %cst_14 = arith.constant 2.000000e-01 : f32
    %34 = vector.broadcast %cst_14 : f32 to vector<64x128xf32>
    %35 = arith.mulf %34, %31 : vector<64x128xf32>
    %36 = arith.select %33, %31, %35 : vector<64x128xi1>, vector<64x128xf32>
    %c0_15 = arith.constant 0 : index
    %c0_16 = arith.constant 0 : index
    %c0_17 = arith.constant 0 : index
    %37 = vector.load %arg4[%c0_15, %c0_16, %c0_17] : memref<1x64x128xf32, #tpu.memory_space<vmem>>, vector<1x64x128xf32>
    %38 = vector.shape_cast %37 : vector<1x64x128xf32> to vector<64x128xf32>
    %39 = vector.shape_cast %36 : vector<64x128xf32> to vector<1x64x128xf32>
    tpu.vector_store %arg4[%c0_15, %c0_16, %c0_17], %39 {strides = array<i32>} : memref<1x64x128xf32, #tpu.memory_space<vmem>>, vector<1x64x128xf32>,
    return
  }
  func.func @transform_0(%arg0: i32) -> (i32, i32, i32) {
    %c0_i32 = arith.constant 0 : i32
    %c0_i32_0 = arith.constant 0 : i32
    %c0_i32_1 = arith.constant 0 : i32
    return %arg0, %c0_i32, %c0_i32_0 : i32, i32, i32
  }
  func.func @transform_1(%arg0: i32) -> (i32, i32) {
    %c0_i32 = arith.constant 0 : i32
    %c0_i32_0 = arith.constant 0 : i32
    %c0_i32_1 = arith.constant 0 : i32
    return %c0_i32, %c0_i32_0 : i32, i32
  }
  func.func @transform_2(%arg0: i32) -> (i32, i32) {
    %c0_i32 = arith.constant 0 : i32
    %c0_i32_0 = arith.constant 0 : i32
    %c0_i32_1 = arith.constant 0 : i32
    return %c0_i32, %c0_i32_0 : i32, i32
  }
  func.func @transform_3(%arg0: i32) -> (i32, i32, i32) {
    %c0_i32 = arith.constant 0 : i32
    %c0_i32_0 = arith.constant 0 : i32
    %c0_i32_1 = arith.constant 0 : i32
    return %arg0, %c0_i32, %c0_i32_0 : i32, i32, i32
  }
}

module attributes {stable_mosaic.version = 11 : i64} {
  func.func @_mm_bias_inorm_lrelu_kernel(%arg0: i32, %arg1: memref<1x16x576xbf16, #tpu.memory_space<vmem>>, %arg2: memref<576x128xbf16, #tpu.memory_space<vmem>>, %arg3: memref<1x128xf32, #tpu.memory_space<vmem>>, %arg4: memref<1x16x128xf32, #tpu.memory_space<vmem>>) attributes {dimension_semantics = [#tpu.dimension_semantics<parallel>], iteration_bounds = array<i64: 2>, scalar_prefetch = 0 : i64, scratch_operands = 0 : i64, tpu.core_type = #tpu.core_type<tc>, window_params = [{transform_indices = @transform_0, window_bounds = array<i64: 1, 16, 576>}, {pipeline_mode = #tpu.pipeline_mode<synchronous>, transform_indices = @transform_1, window_bounds = array<i64: 576, 128>}, {pipeline_mode = #tpu.pipeline_mode<synchronous>, transform_indices = @transform_2, window_bounds = array<i64: 1, 128>}, {transform_indices = @transform_3, window_bounds = array<i64: 1, 16, 128>}]} {
    %c0 = arith.constant 0 : index
    %c0_0 = arith.constant 0 : index
    %c0_1 = arith.constant 0 : index
    %0 = vector.load %arg1[%c0, %c0_0, %c0_1] : memref<1x16x576xbf16, #tpu.memory_space<vmem>>, vector<1x16x576xbf16>
    %1 = vector.shape_cast %0 : vector<1x16x576xbf16> to vector<16x576xbf16>
    %c0_2 = arith.constant 0 : index
    %c0_3 = arith.constant 0 : index
    %2 = vector.load %arg2[%c0_2, %c0_3] : memref<576x128xbf16, #tpu.memory_space<vmem>>, vector<576x128xbf16>
    %cst = arith.constant dense<0.000000e+00> : vector<16x128xf32>
    %3 = tpu.matmul %1, %2, %cst {dimension_numbers = #tpu.dot_dimension_numbers<[1], [0], [0], [1], [0, 0, 1, 1], [], []>} : vector<16x576xbf16>, vector<576x128xbf16>, vector<16x128xf32> -> vector<16x128xf32>
    %c0_4 = arith.constant 0 : index
    %c0_5 = arith.constant 0 : index
    %4 = vector.load %arg3[%c0_4, %c0_5] : memref<1x128xf32, #tpu.memory_space<vmem>>, vector<1x128xf32>
    %5 = vector.broadcast %4 : vector<1x128xf32> to vector<16x128xf32>
    %6 = arith.addf %3, %5 : vector<16x128xf32>
    %7 = tpu.iota {dimensions = array<i32: 0>} : vector<16x128xi32>
    %c9_i32 = arith.constant 9 : i32
    %8 = vector.broadcast %c9_i32 : i32 to vector<16x128xi32>
    %9 = arith.cmpi slt, %7, %8 : vector<16x128xi32>
    %cst_6 = arith.constant 0.000000e+00 : f32
    %10 = vector.broadcast %cst_6 : f32 to vector<16x128xf32>
    %11 = arith.select %9, %6, %10 : vector<16x128xi1>, vector<16x128xf32>
    %cst_7 = arith.constant dense<0.000000e+00> : vector<128xf32>
    %12 = vector.multi_reduction <add>, %11, %cst_7 [0] : vector<16x128xf32> to vector<128xf32>
    %13 = vector.shape_cast %12 : vector<128xf32> to vector<1x128xf32>
    %cst_8 = arith.constant 0.111111112 : f32
    %14 = vector.broadcast %cst_8 : f32 to vector<1x128xf32>
    %15 = arith.mulf %13, %14 : vector<1x128xf32>
    %16 = vector.broadcast %15 : vector<1x128xf32> to vector<16x128xf32>
    %17 = arith.subf %6, %16 : vector<16x128xf32>
    %cst_9 = arith.constant 0.000000e+00 : f32
    %18 = vector.broadcast %cst_9 : f32 to vector<16x128xf32>
    %19 = arith.select %9, %17, %18 : vector<16x128xi1>, vector<16x128xf32>
    %20 = arith.mulf %19, %19 : vector<16x128xf32>
    %cst_10 = arith.constant dense<0.000000e+00> : vector<128xf32>
    %21 = vector.multi_reduction <add>, %20, %cst_10 [0] : vector<16x128xf32> to vector<128xf32>
    %22 = vector.shape_cast %21 : vector<128xf32> to vector<1x128xf32>
    %cst_11 = arith.constant 0.111111112 : f32
    %23 = vector.broadcast %cst_11 : f32 to vector<1x128xf32>
    %24 = arith.mulf %22, %23 : vector<1x128xf32>
    %25 = vector.broadcast %15 : vector<1x128xf32> to vector<16x128xf32>
    %26 = arith.subf %6, %25 : vector<16x128xf32>
    %cst_12 = arith.constant 9.99999974E-6 : f32
    %27 = vector.broadcast %cst_12 : f32 to vector<1x128xf32>
    %28 = arith.addf %24, %27 : vector<1x128xf32>
    %29 = math.rsqrt %28 : vector<1x128xf32>
    %30 = vector.broadcast %29 : vector<1x128xf32> to vector<16x128xf32>
    %31 = arith.mulf %26, %30 : vector<16x128xf32>
    %cst_13 = arith.constant 0.000000e+00 : f32
    %32 = vector.broadcast %cst_13 : f32 to vector<16x128xf32>
    %33 = arith.cmpf ogt, %31, %32 : vector<16x128xf32>
    %cst_14 = arith.constant 2.000000e-01 : f32
    %34 = vector.broadcast %cst_14 : f32 to vector<16x128xf32>
    %35 = arith.mulf %34, %31 : vector<16x128xf32>
    %36 = arith.select %33, %31, %35 : vector<16x128xi1>, vector<16x128xf32>
    %c0_15 = arith.constant 0 : index
    %c0_16 = arith.constant 0 : index
    %c0_17 = arith.constant 0 : index
    %37 = vector.load %arg4[%c0_15, %c0_16, %c0_17] : memref<1x16x128xf32, #tpu.memory_space<vmem>>, vector<1x16x128xf32>
    %38 = vector.shape_cast %37 : vector<1x16x128xf32> to vector<16x128xf32>
    %39 = vector.shape_cast %36 : vector<16x128xf32> to vector<1x16x128xf32>
    tpu.vector_store %arg4[%c0_15, %c0_16, %c0_17], %39 {strides = array<i32>} : memref<1x16x128xf32, #tpu.memory_space<vmem>>, vector<1x16x128xf32>,
    return
  }
  func.func @transform_0(%arg0: i32) -> (i32, i32, i32) {
    %c0_i32 = arith.constant 0 : i32
    %c0_i32_0 = arith.constant 0 : i32
    %c0_i32_1 = arith.constant 0 : i32
    return %arg0, %c0_i32, %c0_i32_0 : i32, i32, i32
  }
  func.func @transform_1(%arg0: i32) -> (i32, i32) {
    %c0_i32 = arith.constant 0 : i32
    %c0_i32_0 = arith.constant 0 : i32
    %c0_i32_1 = arith.constant 0 : i32
    return %c0_i32, %c0_i32_0 : i32, i32
  }
  func.func @transform_2(%arg0: i32) -> (i32, i32) {
    %c0_i32 = arith.constant 0 : i32
    %c0_i32_0 = arith.constant 0 : i32
    %c0_i32_1 = arith.constant 0 : i32
    return %c0_i32, %c0_i32_0 : i32, i32
  }
  func.func @transform_3(%arg0: i32) -> (i32, i32, i32) {
    %c0_i32 = arith.constant 0 : i32
    %c0_i32_0 = arith.constant 0 : i32
    %c0_i32_1 = arith.constant 0 : i32
    return %arg0, %c0_i32, %c0_i32_0 : i32, i32, i32
  }
}

module attributes {stable_mosaic.version = 11 : i64} {
  func.func @_mm_bias_act_kernel(%arg0: i32, %arg1: i32, %arg2: memref<24x64xbf16, #tpu.memory_space<vmem>>, %arg3: memref<64x128xbf16, #tpu.memory_space<vmem>>, %arg4: memref<1x128xf32, #tpu.memory_space<vmem>>, %arg5: memref<24x128xf32, #tpu.memory_space<vmem>>) attributes {dimension_semantics = [#tpu.dimension_semantics<parallel>, #tpu.dimension_semantics<parallel>], iteration_bounds = array<i64: 1, 1>, scalar_prefetch = 0 : i64, scratch_operands = 0 : i64, tpu.core_type = #tpu.core_type<tc>, window_params = [{transform_indices = @transform_0, window_bounds = array<i64: 24, 64>}, {transform_indices = @transform_1, window_bounds = array<i64: 64, 128>}, {transform_indices = @transform_2, window_bounds = array<i64: 1, 128>}, {transform_indices = @transform_3, window_bounds = array<i64: 24, 128>}]} {
    %c0 = arith.constant 0 : index
    %c0_0 = arith.constant 0 : index
    %0 = vector.load %arg2[%c0, %c0_0] : memref<24x64xbf16, #tpu.memory_space<vmem>>, vector<24x64xbf16>
    %c0_1 = arith.constant 0 : index
    %c0_2 = arith.constant 0 : index
    %1 = vector.load %arg3[%c0_1, %c0_2] : memref<64x128xbf16, #tpu.memory_space<vmem>>, vector<64x128xbf16>
    %cst = arith.constant dense<0.000000e+00> : vector<24x128xf32>
    %2 = tpu.matmul %0, %1, %cst {dimension_numbers = #tpu.dot_dimension_numbers<[1], [0], [0], [1], [0, 0, 1, 1], [], []>} : vector<24x64xbf16>, vector<64x128xbf16>, vector<24x128xf32> -> vector<24x128xf32>
    %c0_3 = arith.constant 0 : index
    %c0_4 = arith.constant 0 : index
    %3 = vector.load %arg4[%c0_3, %c0_4] : memref<1x128xf32, #tpu.memory_space<vmem>>, vector<1x128xf32>
    %4 = vector.broadcast %3 : vector<1x128xf32> to vector<24x128xf32>
    %5 = arith.addf %2, %4 : vector<24x128xf32>
    %cst_5 = arith.constant 0.000000e+00 : f32
    %6 = vector.broadcast %cst_5 : f32 to vector<24x128xf32>
    %7 = arith.subf %6, %5 : vector<24x128xf32>
    %8 = math.exp %7 : vector<24x128xf32>
    %cst_6 = arith.constant 1.000000e+00 : f32
    %9 = vector.broadcast %cst_6 : f32 to vector<24x128xf32>
    %10 = arith.addf %9, %8 : vector<24x128xf32>
    %cst_7 = arith.constant 1.000000e+00 : f32
    %11 = vector.broadcast %cst_7 : f32 to vector<24x128xf32>
    %12 = arith.divf %11, %10 : vector<24x128xf32>
    %c0_8 = arith.constant 0 : index
    %c0_9 = arith.constant 0 : index
    %13 = vector.load %arg5[%c0_8, %c0_9] : memref<24x128xf32, #tpu.memory_space<vmem>>, vector<24x128xf32>
    tpu.vector_store %arg5[%c0_8, %c0_9], %12 {strides = array<i32>} : memref<24x128xf32, #tpu.memory_space<vmem>>, vector<24x128xf32>,
    return
  }
  func.func @transform_0(%arg0: i32, %arg1: i32) -> (i32, i32) {
    %c0_i32 = arith.constant 0 : i32
    %c0_i32_0 = arith.constant 0 : i32
    return %arg0, %c0_i32 : i32, i32
  }
  func.func @transform_1(%arg0: i32, %arg1: i32) -> (i32, i32) {
    %c0_i32 = arith.constant 0 : i32
    %c0_i32_0 = arith.constant 0 : i32
    return %c0_i32, %arg1 : i32, i32
  }
  func.func @transform_2(%arg0: i32, %arg1: i32) -> (i32, i32) {
    %c0_i32 = arith.constant 0 : i32
    %c0_i32_0 = arith.constant 0 : i32
    return %c0_i32, %arg1 : i32, i32
  }
  func.func @transform_3(%arg0: i32, %arg1: i32) -> (i32, i32) {
    %c0_i32 = arith.constant 0 : i32
    return %arg0, %arg1 : i32, i32
  }
}

</mosaic_0001>

<llo_original>
// kernel: dis_forward.5
$region0: #{dis_forward.5}
  #allocation0 [shape = 'u32[]', space=smem, size = 0x4, offset = 0x4, fixed_abs, tag = 'smem constant byte address 0x4 - core index']
  #allocation1 [shape = 'u32[144,128]{1,0:T(1,128)}', space=vmem, size = 0x12000, scoped, tag = 'internal scratch']
  %s0 = inlined_call_operand.vmem [shape: bf16[512,16], index: 0, kind: input, shape index: {}]
  %s1 = inlined_call_operand.vmem [shape: bf16[16,128], index: 1, kind: input, shape index: {}]
  %s2 = inlined_call_operand.vmem [shape: f32[1,128], index: 2, kind: input, shape index: {}]
  %s3 = inlined_call_operand.vmem [shape: f32[512,128], index: 3, kind: output, shape index: {}]
  %s4 = sld [smem:[#allocation0]]
  $region45: #{dis_forward.5} parent=0
    _
  %s6 = ssub.s32 1, %s4
  %s7 = scalar_select 0, %s6, %s4
  loop: start=0, step=1, limit=6
  $region2: #{dis_forward.5} parent=0 // loop_pre_header
    _
  $region3: #{dis_forward.5} parent=0 // loop_header
    %s9 = sphi 0, %s13
    %p10 = scmp.ge.s32.totalorder %s9, 6
    %s16 = sphi 0, %s28
    %s17 = sphi 0, %s24
    %s18 = sphi 0, %s16
    %s19 = sphi 0, %s17
    %s20 = sphi 0, %s18
    %s21 = sphi 0, %s19
    %s31 = sphi 0, %s33
    %s34 = sphi 0, %s31
    %s35 = sphi 0, %s34
    %s51 = sphi 0, %s35
    %s57 = sphi 0, %s59
    %s60 = sphi 0, %s57
    %s61 = sphi 0, %s60
    %s77 = sphi 0, %s61
    %s83 = sphi 0, %s85
    %s86 = sphi 0, %s83
    %s87 = sphi 0, %s86
    %s103 = sphi 0, %s87
    %s111 = sphi 0, %s113
    %s114 = sphi 0, %s111
    %s115 = sphi 0, %s114
    %s131 = sphi 0, %s115
  $region4: #{dis_forward.5} parent=0 // loop_header_branch
    %12 = sbr.rel (%p10) target = $region8
  $region5: #{dis_forward.5} parent=0 // loop_body
    %s14 = ssub.s32 %s9, 1
    %s15 = ssub.s32 %s9, 2
    %s22 = sadd.s32 1, %s17
    %p23 = scmp.ge.s32.totalorder %s22, 1
    %s24 = scalar_select %p23, 0, %s22
    %s25 = sadd.s32 1, %s16
    %s26 = scalar_select %p23, %s25, %s16
    %p27 = scmp.ge.s32.totalorder %s26, 4
    %s28 = scalar_select %p27, 0, %s26
    %s29 = ssub.s32 %s16, %s28
    %p30 = scmp.eq.s32.totalorder %s29, 0
    %s32 = sadd.s32 %s31, 1
    %s33 = scalar_select %p30, %s31, %s32
    %p36 = pneg %p30
    %p37 = scmp.eq.s32.totalorder %s9, 3
    %p38 = por %p36, %p37
    %p39 = scmp.ne.s32.totalorder %s31, %s34
    %p40 = scmp.eq.s32.totalorder %s9, 0
    %p41 = por %p39, %p40
    %p42 = scmp.ne.s32.totalorder %s31, %s34
    %p43 = scmp.eq.s32.totalorder %s14, 3
    %p44 = por %p42, %p43
    %p45 = scmp.ne.s32.totalorder %s34, %s35
    %p46 = scmp.eq.s32.totalorder %s14, 0
    %p47 = por %p45, %p46
    %p48 = scmp.ne.s32.totalorder %s34, %s35
    %p49 = scmp.eq.s32.totalorder %s15, 3
    %p50 = por %p48, %p49
    %p52 = scmp.ne.s32.totalorder %s35, %s51
    %p53 = scmp.eq.s32.totalorder %s15, 0
    %p54 = por %p52, %p53
    %s55 = ssub.s32 %s17, %s24
    %p56 = scmp.eq.s32.totalorder %s55, 0
    %s58 = sadd.s32 %s57, 1
    %s59 = scalar_select %p56, %s57, %s58
    %p62 = pneg %p56
    %p63 = scmp.eq.s32.totalorder %s9, 3
    %p64 = por %p62, %p63
    %p65 = scmp.ne.s32.totalorder %s57, %s60
    %p66 = scmp.eq.s32.totalorder %s9, 0
    %p67 = por %p65, %p66
    %p68 = scmp.ne.s32.totalorder %s57, %s60
    %p69 = scmp.eq.s32.totalorder %s14, 3
    %p70 = por %p68, %p69
    %p71 = scmp.ne.s32.totalorder %s60, %s61
    %p72 = scmp.eq.s32.totalorder %s14, 0
    %p73 = por %p71, %p72
    %p74 = scmp.ne.s32.totalorder %s60, %s61
    %p75 = scmp.eq.s32.totalorder %s15, 3
    %p76 = por %p74, %p75
    %p78 = scmp.ne.s32.totalorder %s61, %s77
    %p79 = scmp.eq.s32.totalorder %s15, 0
    %p80 = por %p78, %p79
    %s81 = ssub.s32 %s17, %s24
    %p82 = scmp.eq.s32.totalorder %s81, 0
    %s84 = sadd.s32 %s83, 1
    %s85 = scalar_select %p82, %s83, %s84
    %p88 = pneg %p82
    %p89 = scmp.eq.s32.totalorder %s9, 3
    %p90 = por %p88, %p89
    %p91 = scmp.ne.s32.totalorder %s83, %s86
    %p92 = scmp.eq.s32.totalorder %s9, 0
    %p93 = por %p91, %p92
    %p94 = scmp.ne.s32.totalorder %s83, %s86
    %p95 = scmp.eq.s32.totalorder %s14, 3
    %p96 = por %p94, %p95
    %p97 = scmp.ne.s32.totalorder %s86, %s87
    %p98 = scmp.eq.s32.totalorder %s14, 0
    %p99 = por %p97, %p98
    %p100 = scmp.ne.s32.totalorder %s86, %s87
    %p101 = scmp.eq.s32.totalorder %s15, 3
    %p102 = por %p100, %p101
    %p104 = scmp.ne.s32.totalorder %s87, %s103
    %p105 = scmp.eq.s32.totalorder %s15, 0
    %p106 = por %p104, %p105
    %s107 = ssub.s32 %s16, %s28
    %s108 = ssub.s32 %s17, %s24
    %s109 = sor.u32 %s107, %s108
    %p110 = scmp.eq.s32.totalorder %s109, 0
    %s112 = sadd.s32 %s111, 1
    %s113 = scalar_select %p110, %s111, %s112
    %p116 = pneg %p110
    %p117 = scmp.eq.s32.totalorder %s9, 3
    %p118 = por %p116, %p117
    %p119 = scmp.ne.s32.totalorder %s111, %s114
    %p120 = scmp.eq.s32.totalorder %s9, 0
    %p121 = por %p119, %p120
    %p122 = scmp.ne.s32.totalorder %s111, %s114
    %p123 = scmp.eq.s32.totalorder %s14, 3
    %p124 = por %p122, %p123
    %p125 = scmp.ne.s32.totalorder %s114, %s115
    %p126 = scmp.eq.s32.totalorder %s14, 0
    %p127 = por %p125, %p126
    %p128 = scmp.ne.s32.totalorder %s114, %s115
    %p129 = scmp.eq.s32.totalorder %s15, 3
    %p130 = por %p128, %p129
    %p132 = scmp.ne.s32.totalorder %s115, %s131
    %p133 = scmp.eq.s32.totalorder %s15, 0
    %p134 = por %p132, %p133
    %p135 = scmp.le.s32.totalorder 1, %s9
    %p136 = scmp.lt.s32.totalorder %s9, 5
    %p137 = pnand %p135, %p136
    %p138 = pneg %p137
    // Predicated region
    $region9: #{dis_forward.5} parent=5 // pred_check
      _
    $region10: #{dis_forward.5} parent=5 // pred_check_branch
      %140 = sbr.rel (%p137) target = $region12
    $region11: #{dis_forward.5} parent=5 // pred_region
      %s141 = ssub.s32 %s9, 1
      // Predicated region
      $region13: #{dis_forward.5} parent=11 // pred_check
        %p142 = pneg %p73
      $region14: #{dis_forward.5} parent=11 // pred_check_branch
        %144 = sbr.rel (%p142) target = $region16
      $region15: #{dis_forward.5} parent=11 // pred_region
        %p145 = scmp.lt.s32.totalorder %s19, 0
        %s146 = scalar_select %p145, %s19, 0
        %s147 = smul.addr %s146, 4
        %s148 = scalar_lea.vmem %s1, %s147
      $region16: #{dis_forward.5} parent=11 // pred_fallthru
        _
      // Predicated region
      $region17: #{dis_forward.5} parent=11 // pred_check
        %p149 = pneg %p99
      $region18: #{dis_forward.5} parent=11 // pred_check_branch
        %151 = sbr.rel (%p149) target = $region20
      $region19: #{dis_forward.5} parent=11 // pred_region
        %p152 = scmp.lt.s32.totalorder %s19, 0
        %s153 = scalar_select %p152, %s19, 0
        %s154 = scalar_lea.vmem %s2, %s153
      $region20: #{dis_forward.5} parent=11 // pred_fallthru
        _
    $region12: #{dis_forward.5} parent=5 // pred_fallthru
      _
    %p155 = scmp.lt.s32.totalorder %s9, 4
    // Predicated region
    $region21: #{dis_forward.5} parent=5 // pred_check
      %p156 = pneg %p155
    $region22: #{dis_forward.5} parent=5 // pred_check_branch
      %158 = sbr.rel (%p156) target = $region24
    $region23: #{dis_forward.5} parent=5 // pred_region
      // Predicated region
      $region25: #{dis_forward.5} parent=23 // pred_check
        %p159 = pneg %p41
      $region26: #{dis_forward.5} parent=23 // pred_check_branch
        %161 = sbr.rel (%p159) target = $region28
      $region27: #{dis_forward.5} parent=23 // pred_region
        %s162 = smul.u32 16, %s16
        %p163 = scmp.lt.s32.totalorder %s162, 63
        %s164 = scalar_select %p163, %s162, 63
        %s165 = smul.addr %s164, 4
        %s166 = scalar_lea.vmem %s0, %s165
        %s167 = smul.u32 16, %s16
      $region28: #{dis_forward.5} parent=23 // pred_fallthru
        _
    $region24: #{dis_forward.5} parent=5 // pred_fallthru
      _
    %p168 = scmp.le.s32.totalorder 1, %s9
    %p169 = scmp.lt.s32.totalorder %s9, 5
    %p170 = pnand %p168, %p169
    %p171 = pneg %p170
    // Predicated region
    $region29: #{dis_forward.5} parent=5 // pred_check
      _
    $region30: #{dis_forward.5} parent=5 // pred_check_branch
      %173 = sbr.rel (%p170) target = $region32
    $region31: #{dis_forward.5} parent=5 // pred_region
      %s174 = ssub.s32 %s9, 1
      %s175 = smul.u32 16, %s18
      %p176 = scmp.lt.s32.totalorder %s175, 63
      %s177 = scalar_select %p176, %s175, 63
      %s178 = smul.addr %s177, 4
      %s179 = scalar_lea.vmem %s0, %s178
      %p180 = pneg %p47
      %p181 = pneg %p44
      %p182 = scmp.lt.s32.totalorder %s19, 0
      %s183 = scalar_select %p182, %s19, 0
      %s184 = smul.addr %s183, 4
      %s185 = scalar_lea.vmem %s1, %s184
      %p186 = pneg %p73
      %p187 = pneg %p70
      %p188 = scmp.lt.s32.totalorder %s19, 0
      %s189 = scalar_select %p188, %s19, 0
      %s190 = scalar_lea.vmem %s2, %s189
      %p191 = pneg %p99
      %p192 = pneg %p96
      %p193 = pneg %p127
      %p194 = pneg %p124
      %s195 = smul.u32 16, %s18
      %p196 = scmp.lt.s32.totalorder %s195, 63
      %s197 = scalar_select %p196, %s195, 63
      %p198 = scmp.lt.s32.totalorder %s19, 0
      %s199 = scalar_select %p198, %s19, 0
      %s200 = sadd.s32 %s199, %s197
      %s201 = smul.addr %s200, 8
      %s202 = scalar_lea.vmem %s3, %s201
      %s203 = smul.u32 16, %s18
      %p204 = scmp.lt.s32.totalorder %s203, 63
      %s205 = scalar_select %p204, %s203, 63
      %s206 = smul.addr %s205, 4
      %s207 = scalar_lea.vmem %s0, %s206
      %s208 = smul.u32 16, %s18
      %p209 = scmp.lt.s32.totalorder %s19, 0
      %s210 = scalar_select %p209, %s19, 0
      %s211 = smul.addr %s210, 4
      %s212 = scalar_lea.vmem %s1, %s211
      %p213 = scmp.lt.s32.totalorder %s19, 0
      %s214 = scalar_select %p213, %s19, 0
      %s215 = scalar_lea.vmem %s2, %s214
      %s216 = smul.u32 16, %s18
      %p217 = scmp.lt.s32.totalorder %s216, 63
      %s218 = scalar_select %p217, %s216, 63
      %p219 = scmp.lt.s32.totalorder %s19, 0
      %s220 = scalar_select %p219, %s19, 0
      %s221 = sadd.s32 %s220, %s218
      %s222 = smul.addr %s221, 8
      %s223 = scalar_lea.vmem %s3, %s222
      %s224 = smul.u32 16, %s18
      %v226 = vld [vmem:[%s207] sm:$0xf]
      %v227 = vld [vmem:[%s207 + $0x4] sm:$0xf]
      %v228 = vld [vmem:[%s207 + $0x8] sm:$0xf]
      %v229 = vld [vmem:[%s207 + $0xc] sm:$0xf]
      %v230 = vld [vmem:[%s207 + $0x10] sm:$0xf]
      %v231 = vld [vmem:[%s207 + $0x14] sm:$0xf]
      %v232 = vld [vmem:[%s207 + $0x18] sm:$0xf]
      %v233 = vld [vmem:[%s207 + $0x1c] sm:$0xf]
      %v234 = vld [vmem:[%s207 + $0x20] sm:$0xf]
      %v235 = vld [vmem:[%s207 + $0x24] sm:$0xf]
      %v236 = vld [vmem:[%s207 + $0x28] sm:$0xf]
      %v237 = vld [vmem:[%s207 + $0x2c] sm:$0xf]
      %v238 = vld [vmem:[%s207 + $0x30] sm:$0xf]
      %v239 = vld [vmem:[%s207 + $0x34] sm:$0xf]
      %v240 = vld [vmem:[%s207 + $0x38] sm:$0xf]
      %v241 = vld [vmem:[%s207 + $0x3c] sm:$0xf]
      %v242 = vld [vmem:[%s212] sm:$0xf]
      %v243 = vld [vmem:[%s212 + $0x4] sm:$0xf]
      %v244 = vld [vmem:[%s215] sm:$0x1]
      %v246 = vlaneseq
      %v247 = vshrl.u32 %v246, 7
      %v248 = vsub.s32 0, %v247
      %v249 = vrot.slane %v244, %v248
      %v267 = vunpack.c.l.b16 %v226
      %v268 = vunpack.c.l.b16 %v227
      %v269 = vunpack.c.l.b16 %v228
      %v270 = vunpack.c.l.b16 %v229
      %v271 = vunpack.c.l.b16 %v230
      %v272 = vunpack.c.l.b16 %v231
      %v273 = vunpack.c.l.b16 %v232
      %v274 = vunpack.c.l.b16 %v233
      %v275 = vunpack.c.l.b16 %v234
      %v276 = vunpack.c.l.b16 %v235
      %v277 = vunpack.c.l.b16 %v236
      %v278 = vunpack.c.l.b16 %v237
      %v279 = vunpack.c.l.b16 %v238
      %v280 = vunpack.c.l.b16 %v239
      %v281 = vunpack.c.l.b16 %v240
      %v282 = vunpack.c.l.b16 %v241
      %v283 = vpack.c.b16 %v268, %v267
      %v284 = vpack.c.b16 %v270, %v269
      %v285 = vpack.c.b16 %v272, %v271
      %v286 = vpack.c.b16 %v274, %v273
      %v287 = vpack.c.b16 %v276, %v275
      %v288 = vpack.c.b16 %v278, %v277
      %v289 = vpack.c.b16 %v280, %v279
      %v290 = vpack.c.b16 %v282, %v281
      %v293 = vunpack.c.l.b16 %v242
      %v294 = vunpack.c.l.b16 %v243
      %v295 = vpack.c.b16 %v294, %v293
      %vm297 = vcmask 130048
      %v299 = vsel %vm297, %v283, 0
      %v302 = vsel %vm297, %v284, 0
      %v305 = vsel %vm297, %v285, 0
      %v308 = vsel %vm297, %v286, 0
      %v311 = vsel %vm297, %v287, 0
      %v314 = vsel %vm297, %v288, 0
      %v317 = vsel %vm297, %v289, 0
      %v320 = vsel %vm297, %v290, 0
      %322 = vmatprep.subr.bf16.mxu0 0
      %323 = vmatpush1.bf16.msra.mxu0 %v295
      %324 = vmatprep.subr.bf16.mxu0 0
      %325 = vmatpush1.bf16.msra.mxu0 0
      %326 = vmatprep.subr.bf16.mxu0 0
      %327 = vmatpush1.bf16.msra.mxu0 0
      %328 = vmatprep.subr.bf16.mxu0 0
      %329 = vmatpush1.bf16.msra.mxu0 0
      %330 = vmatprep.subr.bf16.mxu0 0
      %331 = vmatpush1.bf16.msra.mxu0 0
      %332 = vmatprep.subr.bf16.mxu0 0
      %333 = vmatpush1.bf16.msra.mxu0 0
      %334 = vmatprep.subr.bf16.mxu0 0
      %335 = vmatpush1.bf16.msra.mxu0 0
      %336 = vmatprep.subr.bf16.mxu0 0
      %337 = vmatpush1.bf16.msra.mxu0 0
      %338 = vmatprep.subr.bf16.mxu0 0
      %339 = vmatpush1.bf16.msra.mxu0 0
      %340 = vmatprep.subr.bf16.mxu0 0
      %341 = vmatpush1.bf16.msra.mxu0 0
      %342 = vmatprep.subr.bf16.mxu0 0
      %343 = vmatpush1.bf16.msra.mxu0 0
      %344 = vmatprep.subr.bf16.mxu0 0
      %345 = vmatpush1.bf16.msra.mxu0 0
      %346 = vmatprep.subr.bf16.mxu0 0
      %347 = vmatpush1.bf16.msra.mxu0 0
      %348 = vmatprep.subr.bf16.mxu0 0
      %349 = vmatpush1.bf16.msra.mxu0 0
      %350 = vmatprep.subr.bf16.mxu0 0
      %351 = vmatpush1.bf16.msra.mxu0 0
      %352 = vmatprep.subr.bf16.mxu0 0
      %353 = vmatpush1.bf16.msra.mxu0 0
      %354 = vmatprep.mubr.bf16.mxu0 0
      %355 = vmatmul.mubr.bf16.gmra.mrb[0].mxu0 %v299
      %v356 = vpop.f32.mrb[0].mxu0
      %v357 = vadd.f32 %v249, %v356
      %v358 = vpop.f32.mrb[0].mxu0
      %v359 = vpop.f32.mrb[0].mxu0
      %v360 = vadd.f32 %v249, %v359
      %v361 = vpop.f32.mrb[0].mxu0
      %362 = vmatprep.mubr.bf16.mxu0 0
      %363 = vmatmul.mubr.bf16.gmra.mrb[0].mxu0 %v302
      %v364 = vpop.f32.mrb[0].mxu0
      %v365 = vadd.f32 %v249, %v364
      %v366 = vpop.f32.mrb[0].mxu0
      %v367 = vpop.f32.mrb[0].mxu0
      %v368 = vadd.f32 %v249, %v367
      %v369 = vpop.f32.mrb[0].mxu0
      %370 = vmatprep.mubr.bf16.mxu0 0
      %371 = vmatmul.mubr.bf16.gmra.mrb[0].mxu0 %v305
      %v372 = vpop.f32.mrb[0].mxu0
      %v373 = vadd.f32 %v249, %v372
      %v374 = vpop.f32.mrb[0].mxu0
      %v375 = vpop.f32.mrb[0].mxu0
      %v376 = vadd.f32 %v249, %v375
      %v377 = vpop.f32.mrb[0].mxu0
      %378 = vmatprep.mubr.bf16.mxu0 0
      %379 = vmatmul.mubr.bf16.gmra.mrb[0].mxu0 %v308
      %v380 = vpop.f32.mrb[0].mxu0
      %v381 = vadd.f32 %v249, %v380
      %v382 = vpop.f32.mrb[0].mxu0
      %v383 = vpop.f32.mrb[0].mxu0
      %v384 = vadd.f32 %v249, %v383
      %v385 = vpop.f32.mrb[0].mxu0
      %386 = vmatprep.mubr.bf16.mxu0 0
      %387 = vmatmul.mubr.bf16.gmra.mrb[0].mxu0 %v311
      %v388 = vpop.f32.mrb[0].mxu0
      %v389 = vadd.f32 %v249, %v388
      %v390 = vpop.f32.mrb[0].mxu0
      %v391 = vpop.f32.mrb[0].mxu0
      %v392 = vadd.f32 %v249, %v391
      %v393 = vpop.f32.mrb[0].mxu0
      %394 = vmatprep.mubr.bf16.mxu0 0
      %395 = vmatmul.mubr.bf16.gmra.mrb[0].mxu0 %v314
      %v396 = vpop.f32.mrb[0].mxu0
      %v397 = vadd.f32 %v249, %v396
      %v398 = vpop.f32.mrb[0].mxu0
      %v399 = vpop.f32.mrb[0].mxu0
      %v400 = vadd.f32 %v249, %v399
      %v401 = vpop.f32.mrb[0].mxu0
      %402 = vmatprep.mubr.bf16.mxu0 0
      %403 = vmatmul.mubr.bf16.gmra.mrb[0].mxu0 %v317
      %v404 = vpop.f32.mrb[0].mxu0
      %v405 = vadd.f32 %v249, %v404
      %v406 = vpop.f32.mrb[0].mxu0
      %v407 = vpop.f32.mrb[0].mxu0
      %v408 = vadd.f32 %v249, %v407
      %v409 = vpop.f32.mrb[0].mxu0
      %410 = vmatprep.mubr.bf16.mxu0 0
      %411 = vmatmul.mubr.bf16.gmra.mrb[0].mxu0 %v320
      %v412 = vpop.f32.mrb[0].mxu0
      %v413 = vadd.f32 %v249, %v412
      %v414 = vpop.f32.mrb[0].mxu0
      %v415 = vpop.f32.mrb[0].mxu0
      %v416 = vadd.f32 %v249, %v415
      %v417 = vpop.f32.mrb[0].mxu0
      %418 = vdwg.mxu0
      %vm419 = vcmp.gt.f32.partialorder %v357, 0.0
      %vm420 = vcmp.gt.f32.partialorder %v360, 0.0
      %vm421 = vcmp.gt.f32.partialorder %v365, 0.0
      %vm422 = vcmp.gt.f32.partialorder %v368, 0.0
      %vm423 = vcmp.gt.f32.partialorder %v373, 0.0
      %vm424 = vcmp.gt.f32.partialorder %v376, 0.0
      %vm425 = vcmp.gt.f32.partialorder %v381, 0.0
      %vm426 = vcmp.gt.f32.partialorder %v384, 0.0
      %vm427 = vcmp.gt.f32.partialorder %v389, 0.0
      %vm428 = vcmp.gt.f32.partialorder %v392, 0.0
      %vm429 = vcmp.gt.f32.partialorder %v397, 0.0
      %vm430 = vcmp.gt.f32.partialorder %v400, 0.0
      %vm431 = vcmp.gt.f32.partialorder %v405, 0.0
      %vm432 = vcmp.gt.f32.partialorder %v408, 0.0
      %vm433 = vcmp.gt.f32.partialorder %v413, 0.0
      %vm434 = vcmp.gt.f32.partialorder %v416, 0.0
      %v435 = vmul.f32 %v357, 0.2
      %v436 = vmul.f32 %v360, 0.2
      %v437 = vmul.f32 %v365, 0.2
      %v438 = vmul.f32 %v368, 0.2
      %v439 = vmul.f32 %v373, 0.2
      %v440 = vmul.f32 %v376, 0.2
      %v441 = vmul.f32 %v381, 0.2
      %v442 = vmul.f32 %v384, 0.2
      %v443 = vmul.f32 %v389, 0.2
      %v444 = vmul.f32 %v392, 0.2
      %v445 = vmul.f32 %v397, 0.2
      %v446 = vmul.f32 %v400, 0.2
      %v447 = vmul.f32 %v405, 0.2
      %v448 = vmul.f32 %v408, 0.2
      %v449 = vmul.f32 %v413, 0.2
      %v450 = vmul.f32 %v416, 0.2
      %v451 = vsel %vm419, %v357, %v435
      %v452 = vsel %vm420, %v360, %v436
      %v453 = vsel %vm421, %v365, %v437
      %v454 = vsel %vm422, %v368, %v438
      %v455 = vsel %vm423, %v373, %v439
      %v456 = vsel %vm424, %v376, %v440
      %v457 = vsel %vm425, %v381, %v441
      %v458 = vsel %vm426, %v384, %v442
      %v459 = vsel %vm427, %v389, %v443
      %v460 = vsel %vm428, %v392, %v444
      %v461 = vsel %vm429, %v397, %v445
      %v462 = vsel %vm430, %v400, %v446
      %v463 = vsel %vm431, %v405, %v447
      %v464 = vsel %vm432, %v408, %v448
      %v465 = vsel %vm433, %v413, %v449
      %v466 = vsel %vm434, %v416, %v450
      %467 = vst [vmem:[%s223] sm:$0xff] %v451
      %468 = vst [vmem:[%s223 + $0x8] sm:$0xff] %v452
      %469 = vst [vmem:[%s223 + $0x10] sm:$0xff] %v453
      %470 = vst [vmem:[%s223 + $0x18] sm:$0xff] %v454
      %471 = vst [vmem:[%s223 + $0x20] sm:$0xff] %v455
      %472 = vst [vmem:[%s223 + $0x28] sm:$0xff] %v456
      %473 = vst [vmem:[%s223 + $0x30] sm:$0xff] %v457
      %474 = vst [vmem:[%s223 + $0x38] sm:$0xff] %v458
      %475 = vst [vmem:[%s223 + $0x40] sm:$0xff] %v459
      %476 = vst [vmem:[%s223 + $0x48] sm:$0xff] %v460
      %477 = vst [vmem:[%s223 + $0x50] sm:$0xff] %v461
      %478 = vst [vmem:[%s223 + $0x58] sm:$0xff] %v462
      %479 = vst [vmem:[%s223 + $0x60] sm:$0xff] %v463
      %480 = vst [vmem:[%s223 + $0x68] sm:$0xff] %v464
      %481 = vst [vmem:[%s223 + $0x70] sm:$0xff] %v465
      %482 = vst [vmem:[%s223 + $0x78] sm:$0xff] %v466
      %s483 = smul.u32 16, %s18
      %p484 = scmp.lt.s32.totalorder %s483, 63
      %s485 = scalar_select %p484, %s483, 63
      %p486 = scmp.lt.s32.totalorder %s19, 0
      %s487 = scalar_select %p486, %s19, 0
      %s488 = sadd.s32 %s487, %s485
      %s489 = smul.addr %s488, 8
      %s490 = scalar_lea.vmem %s3, %s489
      // Predicated region
      $region33: #{dis_forward.5} parent=31 // pred_check
        %p491 = pneg %p124
      $region34: #{dis_forward.5} parent=31 // pred_check_branch
        %493 = sbr.rel (%p491) target = $region36
      $region35: #{dis_forward.5} parent=31 // pred_region
        %s494 = smul.u32 16, %s18
      $region36: #{dis_forward.5} parent=31 // pred_fallthru
        _
    $region32: #{dis_forward.5} parent=5 // pred_fallthru
      _
    %p495 = scmp.le.s32.totalorder 2, %s9
    // Predicated region
    $region37: #{dis_forward.5} parent=5 // pred_check
      %p496 = pneg %p495
    $region38: #{dis_forward.5} parent=5 // pred_check_branch
      %498 = sbr.rel (%p496) target = $region40
    $region39: #{dis_forward.5} parent=5 // pred_region
      %s499 = ssub.s32 %s9, 2
      // Predicated region
      $region41: #{dis_forward.5} parent=39 // pred_check
        %p500 = pneg %p130
      $region42: #{dis_forward.5} parent=39 // pred_check_branch
        %502 = sbr.rel (%p500) target = $region44
      $region43: #{dis_forward.5} parent=39 // pred_region
        %s503 = smul.u32 16, %s20
        %p504 = scmp.lt.s32.totalorder %s503, 63
        %s505 = scalar_select %p504, %s503, 63
        %p506 = scmp.lt.s32.totalorder %s21, 0
        %s507 = scalar_select %p506, %s21, 0
        %s508 = sadd.s32 %s507, %s505
        %s509 = smul.addr %s508, 8
        %s510 = scalar_lea.vmem %s3, %s509
      $region44: #{dis_forward.5} parent=39 // pred_fallthru
        _
    $region40: #{dis_forward.5} parent=5 // pred_fallthru
      _
  $region6: #{dis_forward.5} parent=0 // loop_footer
    %s13 = sadd.s32 1, %s9
  $region7: #{dis_forward.5} parent=0 // loop_footer_branch
    %8 = sbr.rel target = $region3
  $region8: #{dis_forward.5} parent=0 // loop_exit
    _

// kernel: dis_forward.6
$region0: #{dis_forward.6}
  #allocation0 [shape = 'u32[]', space=smem, size = 0x4, offset = 0x4, fixed_abs, tag = 'smem constant byte address 0x4 - core index']
  #allocation1 [shape = 'u32[144,128]{1,0:T(1,128)}', space=vmem, size = 0x12000, scoped, tag = 'internal scratch']
  %s0 = inlined_call_operand.vmem [shape: bf16[2,64,576], index: 0, kind: input, shape index: {}]
  %s1 = inlined_call_operand.vmem [shape: bf16[576,128], index: 1, kind: input, shape index: {}]
  %s2 = inlined_call_operand.vmem [shape: f32[1,128], index: 2, kind: input, shape index: {}]
  %s3 = inlined_call_operand.vmem [shape: f32[2,64,128], index: 3, kind: output, shape index: {}]
  %s4 = sld [smem:[#allocation0]]
  $region45: #{dis_forward.6} parent=0
    _
  %s6 = ssub.s32 1, %s4
  %s7 = scalar_select 0, %s6, %s4
  loop: start=0, step=1, limit=4
  $region2: #{dis_forward.6} parent=0 // loop_pre_header
    _
  $region3: #{dis_forward.6} parent=0 // loop_header
    %s9 = sphi 0, %s13
    %p10 = scmp.ge.s32.totalorder %s9, 4
    %s19 = sphi 0, %s21
    %s22 = sphi 0, %s19
    %s23 = sphi 0, %s22
    %s39 = sphi 0, %s23
    %s43 = sphi 0, %s43
    %s45 = sphi 0, %s43
    %s46 = sphi 0, %s45
    %s60 = sphi 0, %s46
    %s64 = sphi 0, %s64
    %s66 = sphi 0, %s64
    %s67 = sphi 0, %s66
    %s81 = sphi 0, %s67
    %s87 = sphi 0, %s89
    %s90 = sphi 0, %s87
    %s91 = sphi 0, %s90
    %s107 = sphi 0, %s91
  $region4: #{dis_forward.6} parent=0 // loop_header_branch
    %12 = sbr.rel (%p10) target = $region8
  $region5: #{dis_forward.6} parent=0 // loop_body
    %s14 = ssub.s32 %s9, 1
    %s15 = ssub.s32 %s9, 2
    %s16 = sadd.s32 %s9, 1
    %s17 = ssub.s32 %s9, %s16
    %p18 = scmp.eq.s32.totalorder %s17, 0
    %s20 = sadd.s32 %s19, 1
    %s21 = scalar_select %p18, %s19, %s20
    %p24 = pneg %p18
    %p25 = scmp.eq.s32.totalorder %s9, 1
    %p26 = por %p24, %p25
    %p27 = scmp.ne.s32.totalorder %s19, %s22
    %p28 = scmp.eq.s32.totalorder %s9, 0
    %p29 = por %p27, %p28
    %p30 = scmp.ne.s32.totalorder %s19, %s22
    %p31 = scmp.eq.s32.totalorder %s14, 1
    %p32 = por %p30, %p31
    %p33 = scmp.ne.s32.totalorder %s22, %s23
    %p34 = scmp.eq.s32.totalorder %s14, 0
    %p35 = por %p33, %p34
    %p36 = scmp.ne.s32.totalorder %s22, %s23
    %p37 = scmp.eq.s32.totalorder %s15, 1
    %p38 = por %p36, %p37
    %p40 = scmp.ne.s32.totalorder %s23, %s39
    %p41 = scmp.eq.s32.totalorder %s15, 0
    %p42 = por %p40, %p41
    %s44 = sadd.s32 %s43, 1
    %p47 = scmp.eq.s32.totalorder %s9, 1
    %p48 = scmp.ne.s32.totalorder %s43, %s45
    %p49 = scmp.eq.s32.totalorder %s9, 0
    %p50 = por %p48, %p49
    %p51 = scmp.ne.s32.totalorder %s43, %s45
    %p52 = scmp.eq.s32.totalorder %s14, 1
    %p53 = por %p51, %p52
    %p54 = scmp.ne.s32.totalorder %s45, %s46
    %p55 = scmp.eq.s32.totalorder %s14, 0
    %p56 = por %p54, %p55
    %p57 = scmp.ne.s32.totalorder %s45, %s46
    %p58 = scmp.eq.s32.totalorder %s15, 1
    %p59 = por %p57, %p58
    %p61 = scmp.ne.s32.totalorder %s46, %s60
    %p62 = scmp.eq.s32.totalorder %s15, 0
    %p63 = por %p61, %p62
    %s65 = sadd.s32 %s64, 1
    %p68 = scmp.eq.s32.totalorder %s9, 1
    %p69 = scmp.ne.s32.totalorder %s64, %s66
    %p70 = scmp.eq.s32.totalorder %s9, 0
    %p71 = por %p69, %p70
    %p72 = scmp.ne.s32.totalorder %s64, %s66
    %p73 = scmp.eq.s32.totalorder %s14, 1
    %p74 = por %p72, %p73
    %p75 = scmp.ne.s32.totalorder %s66, %s67
    %p76 = scmp.eq.s32.totalorder %s14, 0
    %p77 = por %p75, %p76
    %p78 = scmp.ne.s32.totalorder %s66, %s67
    %p79 = scmp.eq.s32.totalorder %s15, 1
    %p80 = por %p78, %p79
    %p82 = scmp.ne.s32.totalorder %s67, %s81
    %p83 = scmp.eq.s32.totalorder %s15, 0
    %p84 = por %p82, %p83
    %s85 = ssub.s32 %s9, %s16
    %p86 = scmp.eq.s32.totalorder %s85, 0
    %s88 = sadd.s32 %s87, 1
    %s89 = scalar_select %p86, %s87, %s88
    %p92 = pneg %p86
    %p93 = scmp.eq.s32.totalorder %s9, 1
    %p94 = por %p92, %p93
    %p95 = scmp.ne.s32.totalorder %s87, %s90
    %p96 = scmp.eq.s32.totalorder %s9, 0
    %p97 = por %p95, %p96
    %p98 = scmp.ne.s32.totalorder %s87, %s90
    %p99 = scmp.eq.s32.totalorder %s14, 1
    %p100 = por %p98, %p99
    %p101 = scmp.ne.s32.totalorder %s90, %s91
    %p102 = scmp.eq.s32.totalorder %s14, 0
    %p103 = por %p101, %p102
    %p104 = scmp.ne.s32.totalorder %s90, %s91
    %p105 = scmp.eq.s32.totalorder %s15, 1
    %p106 = por %p104, %p105
    %p108 = scmp.ne.s32.totalorder %s91, %s107
    %p109 = scmp.eq.s32.totalorder %s15, 0
    %p110 = por %p108, %p109
    %p111 = scmp.le.s32.totalorder 1, %s9
    %p112 = scmp.lt.s32.totalorder %s9, 3
    %p113 = pnand %p111, %p112
    %p114 = pneg %p113
    // Predicated region
    $region9: #{dis_forward.6} parent=5 // pred_check
      _
    $region10: #{dis_forward.6} parent=5 // pred_check_branch
      %116 = sbr.rel (%p113) target = $region12
    $region11: #{dis_forward.6} parent=5 // pred_region
      %s117 = ssub.s32 %s9, 1
      // Predicated region
      $region13: #{dis_forward.6} parent=11 // pred_check
        %p118 = pneg %p56
      $region14: #{dis_forward.6} parent=11 // pred_check_branch
        %120 = sbr.rel (%p118) target = $region16
      $region15: #{dis_forward.6} parent=11 // pred_region
        _
      $region16: #{dis_forward.6} parent=11 // pred_fallthru
        _
      // Predicated region
      $region17: #{dis_forward.6} parent=11 // pred_check
        %p121 = pneg %p77
      $region18: #{dis_forward.6} parent=11 // pred_check_branch
        %123 = sbr.rel (%p121) target = $region20
      $region19: #{dis_forward.6} parent=11 // pred_region
        _
      $region20: #{dis_forward.6} parent=11 // pred_fallthru
        _
    $region12: #{dis_forward.6} parent=5 // pred_fallthru
      _
    %p124 = scmp.lt.s32.totalorder %s9, 2
    // Predicated region
    $region21: #{dis_forward.6} parent=5 // pred_check
      %p125 = pneg %p124
    $region22: #{dis_forward.6} parent=5 // pred_check_branch
      %127 = sbr.rel (%p125) target = $region24
    $region23: #{dis_forward.6} parent=5 // pred_region
      // Predicated region
      $region25: #{dis_forward.6} parent=23 // pred_check
        %p128 = pneg %p29
      $region26: #{dis_forward.6} parent=23 // pred_check_branch
        %130 = sbr.rel (%p128) target = $region28
      $region27: #{dis_forward.6} parent=23 // pred_region
        %p131 = scmp.lt.s32.totalorder %s9, 1
        %s132 = scalar_select %p131, %s9, 1
        %s133 = smul.addr %s132, 40
        %s134 = smul.addr %s133, 4
        %s135 = scalar_lea.vmem %s0, %s134
      $region28: #{dis_forward.6} parent=23 // pred_fallthru
        _
    $region24: #{dis_forward.6} parent=5 // pred_fallthru
      _
    %p136 = scmp.le.s32.totalorder 1, %s9
    %p137 = scmp.lt.s32.totalorder %s9, 3
    %p138 = pnand %p136, %p137
    %p139 = pneg %p138
    // Predicated region
    $region29: #{dis_forward.6} parent=5 // pred_check
      _
    $region30: #{dis_forward.6} parent=5 // pred_check_branch
      %141 = sbr.rel (%p138) target = $region32
    $region31: #{dis_forward.6} parent=5 // pred_region
      %s142 = ssub.s32 %s9, 1
      %p143 = scmp.lt.s32.totalorder %s14, 1
      %s144 = scalar_select %p143, %s14, 1
      %s145 = smul.addr %s144, 40
      %s146 = smul.addr %s145, 4
      %s147 = scalar_lea.vmem %s0, %s146
      %p148 = pneg %p35
      %p149 = pneg %p32
      %p150 = pneg %p56
      %p151 = pneg %p53
      %p152 = pneg %p77
      %p153 = pneg %p74
      %p154 = pneg %p103
      %p155 = pneg %p100
      %p156 = scmp.lt.s32.totalorder %s14, 1
      %s157 = scalar_select %p156, %s14, 1
      %s158 = smul.addr %s157, 8
      %s159 = smul.addr %s158, 8
      %s160 = scalar_lea.vmem %s3, %s159
      %p161 = scmp.lt.s32.totalorder %s14, 1
      %s162 = scalar_select %p161, %s14, 1
      %s163 = smul.addr %s162, 40
      %s164 = smul.addr %s163, 4
      %s165 = scalar_lea.vmem %s0, %s164
      %p166 = scmp.lt.s32.totalorder %s14, 1
      %s167 = scalar_select %p166, %s14, 1
      %s168 = smul.addr %s167, 8
      %s169 = smul.addr %s168, 8
      %s170 = scalar_lea.vmem %s3, %s169
      %v172 = vld [vmem:[%s165] sm:$0xff]
      %v173 = vld [vmem:[%s165 + $0x8] sm:$0xff]
      %v174 = vld [vmem:[%s165 + $0x10] sm:$0xf]
      %v175 = vld [vmem:[%s165 + $0x14] sm:$0xff]
      %v176 = vld [vmem:[%s165 + $0x1c] sm:$0xff]
      %v177 = vld [vmem:[%s165 + $0x24] sm:$0xf]
      %v178 = vld [vmem:[%s165 + $0x28] sm:$0xff]
      %v179 = vld [vmem:[%s165 + $0x30] sm:$0xff]
      %v180 = vld [vmem:[%s165 + $0x38] sm:$0xf]
      %v181 = vld [vmem:[%s165 + $0x3c] sm:$0xff]
      %v182 = vld [vmem:[%s165 + $0x44] sm:$0xff]
      %v183 = vld [vmem:[%s165 + $0x4c] sm:$0xf]
      %v184 = vld [vmem:[%s165 + $0x50] sm:$0xff]
      %v185 = vld [vmem:[%s165 + $0x58] sm:$0xff]
      %v186 = vld [vmem:[%s165 + $0x60] sm:$0xf]
      %v187 = vld [vmem:[%s165 + $0x64] sm:$0xff]
      %v188 = vld [vmem:[%s165 + $0x6c] sm:$0xff]
      %v189 = vld [vmem:[%s165 + $0x74] sm:$0xf]
      %v190 = vld [vmem:[%s165 + $0x78] sm:$0xff]
      %v191 = vld [vmem:[%s165 + $0x80] sm:$0xff]
      %v192 = vld [vmem:[%s165 + $0x88] sm:$0xf]
      %v193 = vld [vmem:[%s165 + $0x8c] sm:$0xff]
      %v194 = vld [vmem:[%s165 + $0x94] sm:$0xff]
      %v195 = vld [vmem:[%s165 + $0x9c] sm:$0xf]
      %v196 = vld [vmem:[%s1] sm:$0xf]
      %v197 = vld [vmem:[%s1 + $0x4] sm:$0xf]
      %v198 = vld [vmem:[%s1 + $0x8] sm:$0xf]
      %v199 = vld [vmem:[%s1 + $0xc] sm:$0xf]
      %v200 = vld [vmem:[%s1 + $0x10] sm:$0xf]
      %v201 = vld [vmem:[%s1 + $0x14] sm:$0xf]
      %v202 = vld [vmem:[%s1 + $0x18] sm:$0xf]
      %v203 = vld [vmem:[%s1 + $0x1c] sm:$0xf]
      %v204 = vld [vmem:[%s1 + $0x20] sm:$0xf]
      %v205 = vld [vmem:[%s1 + $0x24] sm:$0xf]
      %v206 = vld [vmem:[%s1 + $0x28] sm:$0xf]
      %v207 = vld [vmem:[%s1 + $0x2c] sm:$0xf]
      %v208 = vld [vmem:[%s1 + $0x30] sm:$0xf]
      %v209 = vld [vmem:[%s1 + $0x34] sm:$0xf]
      %v210 = vld [vmem:[%s1 + $0x38] sm:$0xf]
      %v211 = vld [vmem:[%s1 + $0x3c] sm:$0xf]
      %v212 = vld [vmem:[%s1 + $0x40] sm:$0xf]
      %v213 = vld [vmem:[%s1 + $0x44] sm:$0xf]
      %v214 = vld [vmem:[%s1 + $0x48] sm:$0xf]
      %v215 = vld [vmem:[%s1 + $0x4c] sm:$0xf]
      %v216 = vld [vmem:[%s1 + $0x50] sm:$0xf]
      %v217 = vld [vmem:[%s1 + $0x54] sm:$0xf]
      %v218 = vld [vmem:[%s1 + $0x58] sm:$0xf]
      %v219 = vld [vmem:[%s1 + $0x5c] sm:$0xf]
      %v220 = vld [vmem:[%s1 + $0x60] sm:$0xf]
      %v221 = vld [vmem:[%s1 + $0x64] sm:$0xf]
      %v222 = vld [vmem:[%s1 + $0x68] sm:$0xf]
      %v223 = vld [vmem:[%s1 + $0x6c] sm:$0xf]
      %v224 = vld [vmem:[%s1 + $0x70] sm:$0xf]
      %v225 = vld [vmem:[%s1 + $0x74] sm:$0xf]
      %v226 = vld [vmem:[%s1 + $0x78] sm:$0xf]
      %v227 = vld [vmem:[%s1 + $0x7c] sm:$0xf]
      %v228 = vld [vmem:[%s1 + $0x80] sm:$0xf]
      %v229 = vld [vmem:[%s1 + $0x84] sm:$0xf]
      %v230 = vld [vmem:[%s1 + $0x88] sm:$0xf]
      %v231 = vld [vmem:[%s1 + $0x8c] sm:$0xf]
      %v232 = vld [vmem:[%s1 + $0x90] sm:$0xf]
      %v233 = vld [vmem:[%s1 + $0x94] sm:$0xf]
      %v234 = vld [vmem:[%s1 + $0x98] sm:$0xf]
      %v235 = vld [vmem:[%s1 + $0x9c] sm:$0xf]
      %v236 = vld [vmem:[%s1 + $0xa0] sm:$0xf]
      %v237 = vld [vmem:[%s1 + $0xa4] sm:$0xf]
      %v238 = vld [vmem:[%s1 + $0xa8] sm:$0xf]
      %v239 = vld [vmem:[%s1 + $0xac] sm:$0xf]
      %v240 = vld [vmem:[%s1 + $0xb0] sm:$0xf]
      %v241 = vld [vmem:[%s1 + $0xb4] sm:$0xf]
      %v242 = vld [vmem:[%s1 + $0xb8] sm:$0xf]
      %v243 = vld [vmem:[%s1 + $0xbc] sm:$0xf]
      %v244 = vld [vmem:[%s1 + $0xc0] sm:$0xf]
      %v245 = vld [vmem:[%s1 + $0xc4] sm:$0xf]
      %v246 = vld [vmem:[%s1 + $0xc8] sm:$0xf]
      %v247 = vld [vmem:[%s1 + $0xcc] sm:$0xf]
      %v248 = vld [vmem:[%s1 + $0xd0] sm:$0xf]
      %v249 = vld [vmem:[%s1 + $0xd4] sm:$0xf]
      %v250 = vld [vmem:[%s1 + $0xd8] sm:$0xf]
      %v251 = vld [vmem:[%s1 + $0xdc] sm:$0xf]
      %v252 = vld [vmem:[%s1 + $0xe0] sm:$0xf]
      %v253 = vld [vmem:[%s1 + $0xe4] sm:$0xf]
      %v254 = vld [vmem:[%s1 + $0xe8] sm:$0xf]
      %v255 = vld [vmem:[%s1 + $0xec] sm:$0xf]
      %v256 = vld [vmem:[%s1 + $0xf0] sm:$0xf]
      %v257 = vld [vmem:[%s1 + $0xf4] sm:$0xf]
      %v258 = vld [vmem:[%s1 + $0xf8] sm:$0xf]
      %v259 = vld [vmem:[%s1 + $0xfc] sm:$0xf]
      %v260 = vld [vmem:[%s1 + $0x100] sm:$0xf]
      %v261 = vld [vmem:[%s1 + $0x104] sm:$0xf]
      %v262 = vld [vmem:[%s1 + $0x108] sm:$0xf]
      %v263 = vld [vmem:[%s1 + $0x10c] sm:$0xf]
      %v264 = vld [vmem:[%s1 + $0x110] sm:$0xf]
      %v265 = vld [vmem:[%s1 + $0x114] sm:$0xf]
      %v266 = vld [vmem:[%s1 + $0x118] sm:$0xf]
      %v267 = vld [vmem:[%s1 + $0x11c] sm:$0xf]
      %v268 = vld [vmem:[%s2] sm:$0x1]
      %v270 = vlaneseq
      %v271 = vshrl.u32 %v270, 7
      %v272 = vsub.s32 0, %v271
      %v273 = vrot.slane %v268, %v272
      %v299 = vunpack.c.l.b16 %v172
      %v300 = vunpack.c.h.b16 %v172
      %v301 = vunpack.c.l.b16 %v173
      %v302 = vunpack.c.h.b16 %v173
      %v303 = vunpack.c.l.b16 %v174
      %v304 = vunpack.c.l.b16 %v175
      %v305 = vunpack.c.h.b16 %v175
      %v306 = vunpack.c.l.b16 %v176
      %v307 = vunpack.c.h.b16 %v176
      %v308 = vunpack.c.l.b16 %v177
      %v309 = vunpack.c.l.b16 %v178
      %v310 = vunpack.c.h.b16 %v178
      %v311 = vunpack.c.l.b16 %v179
      %v312 = vunpack.c.h.b16 %v179
      %v313 = vunpack.c.l.b16 %v180
      %v314 = vunpack.c.l.b16 %v181
      %v315 = vunpack.c.h.b16 %v181
      %v316 = vunpack.c.l.b16 %v182
      %v317 = vunpack.c.h.b16 %v182
      %v318 = vunpack.c.l.b16 %v183
      %v319 = vunpack.c.l.b16 %v184
      %v320 = vunpack.c.h.b16 %v184
      %v321 = vunpack.c.l.b16 %v185
      %v322 = vunpack.c.h.b16 %v185
      %v323 = vunpack.c.l.b16 %v186
      %v324 = vunpack.c.l.b16 %v187
      %v325 = vunpack.c.h.b16 %v187
      %v326 = vunpack.c.l.b16 %v188
      %v327 = vunpack.c.h.b16 %v188
      %v328 = vunpack.c.l.b16 %v189
      %v329 = vunpack.c.l.b16 %v190
      %v330 = vunpack.c.h.b16 %v190
      %v331 = vunpack.c.l.b16 %v191
      %v332 = vunpack.c.h.b16 %v191
      %v333 = vunpack.c.l.b16 %v192
      %v334 = vunpack.c.l.b16 %v193
      %v335 = vunpack.c.h.b16 %v193
      %v336 = vunpack.c.l.b16 %v194
      %v337 = vunpack.c.h.b16 %v194
      %v338 = vunpack.c.l.b16 %v195
      %v339 = vpack.c.b16 %v304, %v299
      %v340 = vpack.c.b16 %v305, %v300
      %v341 = vpack.c.b16 %v306, %v301
      %v342 = vpack.c.b16 %v307, %v302
      %v343 = vpack.c.b16 %v308, %v303
      %v344 = vpack.c.b16 %v314, %v309
      %v345 = vpack.c.b16 %v315, %v310
      %v346 = vpack.c.b16 %v316, %v311
      %v347 = vpack.c.b16 %v317, %v312
      %v348 = vpack.c.b16 %v318, %v313
      %v349 = vpack.c.b16 %v324, %v319
      %v350 = vpack.c.b16 %v325, %v320
      %v351 = vpack.c.b16 %v326, %v321
      %v352 = vpack.c.b16 %v327, %v322
      %v353 = vpack.c.b16 %v328, %v323
      %v354 = vpack.c.b16 %v334, %v329
      %v355 = vpack.c.b16 %v335, %v330
      %v356 = vpack.c.b16 %v336, %v331
      %v357 = vpack.c.b16 %v337, %v332
      %v358 = vpack.c.b16 %v338, %v333
      %v447 = vunpack.c.l.b16 %v196
      %v448 = vunpack.c.l.b16 %v197
      %v449 = vunpack.c.l.b16 %v198
      %v450 = vunpack.c.l.b16 %v199
      %v451 = vunpack.c.l.b16 %v200
      %v452 = vunpack.c.l.b16 %v201
      %v453 = vunpack.c.l.b16 %v202
      %v454 = vunpack.c.l.b16 %v203
      %v455 = vunpack.c.l.b16 %v204
      %v456 = vunpack.c.l.b16 %v205
      %v457 = vunpack.c.l.b16 %v206
      %v458 = vunpack.c.l.b16 %v207
      %v459 = vunpack.c.l.b16 %v208
      %v460 = vunpack.c.l.b16 %v209
      %v461 = vunpack.c.l.b16 %v210
      %v462 = vunpack.c.l.b16 %v211
      %v463 = vunpack.c.l.b16 %v212
      %v464 = vunpack.c.l.b16 %v213
      %v465 = vunpack.c.l.b16 %v214
      %v466 = vunpack.c.l.b16 %v215
      %v467 = vunpack.c.l.b16 %v216
      %v468 = vunpack.c.l.b16 %v217
      %v469 = vunpack.c.l.b16 %v218
      %v470 = vunpack.c.l.b16 %v219
      %v471 = vunpack.c.l.b16 %v220
      %v472 = vunpack.c.l.b16 %v221
      %v473 = vunpack.c.l.b16 %v222
      %v474 = vunpack.c.l.b16 %v223
      %v475 = vunpack.c.l.b16 %v224
      %v476 = vunpack.c.l.b16 %v225
      %v477 = vunpack.c.l.b16 %v226
      %v478 = vunpack.c.l.b16 %v227
      %v479 = vunpack.c.l.b16 %v228
      %v480 = vunpack.c.l.b16 %v229
      %v481 = vunpack.c.l.b16 %v230
      %v482 = vunpack.c.l.b16 %v231
      %v483 = vunpack.c.l.b16 %v232
      %v484 = vunpack.c.l.b16 %v233
      %v485 = vunpack.c.l.b16 %v234
      %v486 = vunpack.c.l.b16 %v235
      %v487 = vunpack.c.l.b16 %v236
      %v488 = vunpack.c.l.b16 %v237
      %v489 = vunpack.c.l.b16 %v238
      %v490 = vunpack.c.l.b16 %v239
      %v491 = vunpack.c.l.b16 %v240
      %v492 = vunpack.c.l.b16 %v241
      %v493 = vunpack.c.l.b16 %v242
      %v494 = vunpack.c.l.b16 %v243
      %v495 = vunpack.c.l.b16 %v244
      %v496 = vunpack.c.l.b16 %v245
      %v497 = vunpack.c.l.b16 %v246
      %v498 = vunpack.c.l.b16 %v247
      %v499 = vunpack.c.l.b16 %v248
      %v500 = vunpack.c.l.b16 %v249
      %v501 = vunpack.c.l.b16 %v250
      %v502 = vunpack.c.l.b16 %v251
      %v503 = vunpack.c.l.b16 %v252
      %v504 = vunpack.c.l.b16 %v253
      %v505 = vunpack.c.l.b16 %v254
      %v506 = vunpack.c.l.b16 %v255
      %v507 = vunpack.c.l.b16 %v256
      %v508 = vunpack.c.l.b16 %v257
      %v509 = vunpack.c.l.b16 %v258
      %v510 = vunpack.c.l.b16 %v259
      %v511 = vunpack.c.l.b16 %v260
      %v512 = vunpack.c.l.b16 %v261
      %v513 = vunpack.c.l.b16 %v262
      %v514 = vunpack.c.l.b16 %v263
      %v515 = vunpack.c.l.b16 %v264
      %v516 = vunpack.c.l.b16 %v265
      %v517 = vunpack.c.l.b16 %v266
      %v518 = vunpack.c.l.b16 %v267
      %v519 = vpack.c.b16 %v448, %v447
      %v520 = vpack.c.b16 %v450, %v449
      %v521 = vpack.c.b16 %v452, %v451
      %v522 = vpack.c.b16 %v454, %v453
      %v523 = vpack.c.b16 %v456, %v455
      %v524 = vpack.c.b16 %v458, %v457
      %v525 = vpack.c.b16 %v460, %v459
      %v526 = vpack.c.b16 %v462, %v461
      %v527 = vpack.c.b16 %v464, %v463
      %v528 = vpack.c.b16 %v466, %v465
      %v529 = vpack.c.b16 %v468, %v467
      %v530 = vpack.c.b16 %v470, %v469
      %v531 = vpack.c.b16 %v472, %v471
      %v532 = vpack.c.b16 %v474, %v473
      %v533 = vpack.c.b16 %v476, %v475
      %v534 = vpack.c.b16 %v478, %v477
      %v535 = vpack.c.b16 %v480, %v479
      %v536 = vpack.c.b16 %v482, %v481
      %v537 = vpack.c.b16 %v484, %v483
      %v538 = vpack.c.b16 %v486, %v485
      %v539 = vpack.c.b16 %v488, %v487
      %v540 = vpack.c.b16 %v490, %v489
      %v541 = vpack.c.b16 %v492, %v491
      %v542 = vpack.c.b16 %v494, %v493
      %v543 = vpack.c.b16 %v496, %v495
      %v544 = vpack.c.b16 %v498, %v497
      %v545 = vpack.c.b16 %v500, %v499
      %v546 = vpack.c.b16 %v502, %v501
      %v547 = vpack.c.b16 %v504, %v503
      %v548 = vpack.c.b16 %v506, %v505
      %v549 = vpack.c.b16 %v508, %v507
      %v550 = vpack.c.b16 %v510, %v509
      %v551 = vpack.c.b16 %v512, %v511
      %v552 = vpack.c.b16 %v514, %v513
      %v553 = vpack.c.b16 %v516, %v515
      %v554 = vpack.c.b16 %v518, %v517
      %vm591 = vcmask 523264
      %v593 = vsel %vm591, %v343, 0
      %v596 = vsel %vm591, %v348, 0
      %v599 = vsel %vm591, %v353, 0
      %v602 = vsel %vm591, %v358, 0
      %604 = vmatprep.subr.bf16.mxu0 0
      %605 = vmatpush1.bf16.msra.mxu0 %v519
      %606 = vmatprep.subr.bf16.mxu0 0
      %607 = vmatpush1.bf16.msra.mxu0 %v520
      %608 = vmatprep.subr.bf16.mxu0 0
      %609 = vmatpush1.bf16.msra.mxu0 %v521
      %610 = vmatprep.subr.bf16.mxu0 0
      %611 = vmatpush1.bf16.msra.mxu0 %v522
      %612 = vmatprep.subr.bf16.mxu0 0
      %613 = vmatpush1.bf16.msra.mxu0 %v523
      %614 = vmatprep.subr.bf16.mxu0 0
      %615 = vmatpush1.bf16.msra.mxu0 %v524
      %616 = vmatprep.subr.bf16.mxu0 0
      %617 = vmatpush1.bf16.msra.mxu0 %v525
      %618 = vmatprep.subr.bf16.mxu0 0
      %619 = vmatpush1.bf16.msra.mxu0 %v526
      %620 = vmatprep.subr.bf16.mxu0 0
      %621 = vmatpush1.bf16.msra.mxu0 %v527
      %622 = vmatprep.subr.bf16.mxu0 0
      %623 = vmatpush1.bf16.msra.mxu0 %v528
      %624 = vmatprep.subr.bf16.mxu0 0
      %625 = vmatpush1.bf16.msra.mxu0 %v529
      %626 = vmatprep.subr.bf16.mxu0 0
      %627 = vmatpush1.bf16.msra.mxu0 %v530
      %628 = vmatprep.subr.bf16.mxu0 0
      %629 = vmatpush1.bf16.msra.mxu0 %v531
      %630 = vmatprep.subr.bf16.mxu0 0
      %631 = vmatpush1.bf16.msra.mxu0 %v532
      %632 = vmatprep.subr.bf16.mxu0 0
      %633 = vmatpush1.bf16.msra.mxu0 %v533
      %634 = vmatprep.subr.bf16.mxu0 0
      %635 = vmatpush1.bf16.msra.mxu0 %v534
      %636 = vmatprep.mubr.bf16.mxu0 %v340
      %637 = vmatmul.mubr.bf16.gmra.mrb[0].mxu0 %v339
      %v638 = vpop.f32.mrb[0].mxu0
      %v639 = vadd.f32 %v273, %v638
      %v640 = vpop.f32.mrb[0].mxu0
      %v641 = vpop.f32.mrb[0].mxu0
      %v642 = vadd.f32 %v273, %v641
      %v643 = vpop.f32.mrb[0].mxu0
      %644 = vmatprep.mubr.bf16.mxu0 %v345
      %645 = vmatmul.mubr.bf16.gmra.mrb[0].mxu0 %v344
      %v646 = vpop.f32.mrb[0].mxu0
      %v647 = vadd.f32 %v273, %v646
      %v648 = vpop.f32.mrb[0].mxu0
      %v649 = vpop.f32.mrb[0].mxu0
      %v650 = vadd.f32 %v273, %v649
      %v651 = vpop.f32.mrb[0].mxu0
      %652 = vmatprep.mubr.bf16.mxu0 %v350
      %653 = vmatmul.mubr.bf16.gmra.mrb[0].mxu0 %v349
      %v654 = vpop.f32.mrb[0].mxu0
      %v655 = vadd.f32 %v273, %v654
      %v656 = vpop.f32.mrb[0].mxu0
      %v657 = vpop.f32.mrb[0].mxu0
      %v658 = vadd.f32 %v273, %v657
      %v659 = vpop.f32.mrb[0].mxu0
      %660 = vmatprep.mubr.bf16.mxu0 %v355
      %661 = vmatmul.mubr.bf16.gmra.mrb[0].mxu0 %v354
      %v662 = vpop.f32.mrb[0].mxu0
      %v663 = vadd.f32 %v273, %v662
      %v664 = vpop.f32.mrb[0].mxu0
      %v665 = vpop.f32.mrb[0].mxu0
      %v666 = vadd.f32 %v273, %v665
      %v667 = vpop.f32.mrb[0].mxu0
      %668 = vdwg.mxu0
      %669 = vmatprep.subr.bf16.mxu0 0
      %670 = vmatpush1.bf16.msra.mxu0 %v535
      %671 = vmatprep.subr.bf16.mxu0 0
      %672 = vmatpush1.bf16.msra.mxu0 %v536
      %673 = vmatprep.subr.bf16.mxu0 0
      %674 = vmatpush1.bf16.msra.mxu0 %v537
      %675 = vmatprep.subr.bf16.mxu0 0
      %676 = vmatpush1.bf16.msra.mxu0 %v538
      %677 = vmatprep.subr.bf16.mxu0 0
      %678 = vmatpush1.bf16.msra.mxu0 %v539
      %679 = vmatprep.subr.bf16.mxu0 0
      %680 = vmatpush1.bf16.msra.mxu0 %v540
      %681 = vmatprep.subr.bf16.mxu0 0
      %682 = vmatpush1.bf16.msra.mxu0 %v541
      %683 = vmatprep.subr.bf16.mxu0 0
      %684 = vmatpush1.bf16.msra.mxu0 %v542
      %685 = vmatprep.subr.bf16.mxu0 0
      %686 = vmatpush1.bf16.msra.mxu0 %v543
      %687 = vmatprep.subr.bf16.mxu0 0
      %688 = vmatpush1.bf16.msra.mxu0 %v544
      %689 = vmatprep.subr.bf16.mxu0 0
      %690 = vmatpush1.bf16.msra.mxu0 %v545
      %691 = vmatprep.subr.bf16.mxu0 0
      %692 = vmatpush1.bf16.msra.mxu0 %v546
      %693 = vmatprep.subr.bf16.mxu0 0
      %694 = vmatpush1.bf16.msra.mxu0 %v547
      %695 = vmatprep.subr.bf16.mxu0 0
      %696 = vmatpush1.bf16.msra.mxu0 %v548
      %697 = vmatprep.subr.bf16.mxu0 0
      %698 = vmatpush1.bf16.msra.mxu0 %v549
      %699 = vmatprep.subr.bf16.mxu0 0
      %700 = vmatpush1.bf16.msra.mxu0 %v550
      %701 = vmatprep.mubr.bf16.mxu0 %v342
      %702 = vmatmul.mubr.bf16.gmra.mrb[0].mxu0 %v341
      %v703 = vpop.f32.mrb[0].mxu0
      %v704 = vadd.f32 %v639, %v703
      %v705 = vpop.f32.mrb[0].mxu0
      %v706 = vpop.f32.mrb[0].mxu0
      %v707 = vadd.f32 %v642, %v706
      %v708 = vpop.f32.mrb[0].mxu0
      %709 = vmatprep.mubr.bf16.mxu0 %v347
      %710 = vmatmul.mubr.bf16.gmra.mrb[0].mxu0 %v346
      %v711 = vpop.f32.mrb[0].mxu0
      %v712 = vadd.f32 %v647, %v711
      %v713 = vpop.f32.mrb[0].mxu0
      %v714 = vpop.f32.mrb[0].mxu0
      %v715 = vadd.f32 %v650, %v714
      %v716 = vpop.f32.mrb[0].mxu0
      %717 = vmatprep.mubr.bf16.mxu0 %v352
      %718 = vmatmul.mubr.bf16.gmra.mrb[0].mxu0 %v351
      %v719 = vpop.f32.mrb[0].mxu0
      %v720 = vadd.f32 %v655, %v719
      %v721 = vpop.f32.mrb[0].mxu0
      %v722 = vpop.f32.mrb[0].mxu0
      %v723 = vadd.f32 %v658, %v722
      %v724 = vpop.f32.mrb[0].mxu0
      %725 = vmatprep.mubr.bf16.mxu0 %v357
      %726 = vmatmul.mubr.bf16.gmra.mrb[0].mxu0 %v356
      %v727 = vpop.f32.mrb[0].mxu0
      %v728 = vadd.f32 %v663, %v727
      %v729 = vpop.f32.mrb[0].mxu0
      %v730 = vpop.f32.mrb[0].mxu0
      %v731 = vadd.f32 %v666, %v730
      %v732 = vpop.f32.mrb[0].mxu0
      %733 = vdwg.mxu0
      %734 = vmatprep.subr.bf16.mxu0 0
      %735 = vmatpush1.bf16.msra.mxu0 %v551
      %736 = vmatprep.subr.bf16.mxu0 0
      %737 = vmatpush1.bf16.msra.mxu0 %v552
      %738 = vmatprep.subr.bf16.mxu0 0
      %739 = vmatpush1.bf16.msra.mxu0 %v553
      %740 = vmatprep.subr.bf16.mxu0 0
      %741 = vmatpush1.bf16.msra.mxu0 %v554
      %742 = vmatprep.subr.bf16.mxu0 0
      %743 = vmatpush1.bf16.msra.mxu0 0
      %744 = vmatprep.subr.bf16.mxu0 0
      %745 = vmatpush1.bf16.msra.mxu0 0
      %746 = vmatprep.subr.bf16.mxu0 0
      %747 = vmatpush1.bf16.msra.mxu0 0
      %748 = vmatprep.subr.bf16.mxu0 0
      %749 = vmatpush1.bf16.msra.mxu0 0
      %750 = vmatprep.subr.bf16.mxu0 0
      %751 = vmatpush1.bf16.msra.mxu0 0
      %752 = vmatprep.subr.bf16.mxu0 0
      %753 = vmatpush1.bf16.msra.mxu0 0
      %754 = vmatprep.subr.bf16.mxu0 0
      %755 = vmatpush1.bf16.msra.mxu0 0
      %756 = vmatprep.subr.bf16.mxu0 0
      %757 = vmatpush1.bf16.msra.mxu0 0
      %758 = vmatprep.subr.bf16.mxu0 0
      %759 = vmatpush1.bf16.msra.mxu0 0
      %760 = vmatprep.subr.bf16.mxu0 0
      %761 = vmatpush1.bf16.msra.mxu0 0
      %762 = vmatprep.subr.bf16.mxu0 0
      %763 = vmatpush1.bf16.msra.mxu0 0
      %764 = vmatprep.subr.bf16.mxu0 0
      %765 = vmatpush1.bf16.msra.mxu0 0
      %766 = vmatprep.mubr.bf16.mxu0 0
      %767 = vmatmul.mubr.bf16.gmra.mrb[0].mxu0 %v593
      %v768 = vpop.f32.mrb[0].mxu0
      %v769 = vadd.f32 %v704, %v768
      %v770 = vpop.f32.mrb[0].mxu0
      %v771 = vpop.f32.mrb[0].mxu0
      %v772 = vadd.f32 %v707, %v771
      %v773 = vpop.f32.mrb[0].mxu0
      %774 = vmatprep.mubr.bf16.mxu0 0
      %775 = vmatmul.mubr.bf16.gmra.mrb[0].mxu0 %v596
      %v776 = vpop.f32.mrb[0].mxu0
      %v777 = vadd.f32 %v712, %v776
      %v778 = vpop.f32.mrb[0].mxu0
      %v779 = vpop.f32.mrb[0].mxu0
      %v780 = vadd.f32 %v715, %v779
      %v781 = vpop.f32.mrb[0].mxu0
      %782 = vmatprep.mubr.bf16.mxu0 0
      %783 = vmatmul.mubr.bf16.gmra.mrb[0].mxu0 %v599
      %v784 = vpop.f32.mrb[0].mxu0
      %v785 = vadd.f32 %v720, %v784
      %v786 = vpop.f32.mrb[0].mxu0
      %v787 = vpop.f32.mrb[0].mxu0
      %v788 = vadd.f32 %v723, %v787
      %v789 = vpop.f32.mrb[0].mxu0
      %790 = vmatprep.mubr.bf16.mxu0 0
      %791 = vmatmul.mubr.bf16.gmra.mrb[0].mxu0 %v602
      %v792 = vpop.f32.mrb[0].mxu0
      %v793 = vadd.f32 %v728, %v792
      %v794 = vpop.f32.mrb[0].mxu0
      %v795 = vpop.f32.mrb[0].mxu0
      %v796 = vadd.f32 %v731, %v795
      %v797 = vpop.f32.mrb[0].mxu0
      %798 = vdwg.mxu0
      %v799 = vlaneseq
      %v800 = vshrl.u32 %v799, 7
      %v801 = vadd.s32 %v800, 8
      %v802 = vadd.s32 %v800, 16
      %v803 = vadd.s32 %v800, 24
      %v804 = vadd.s32 %v800, 32
      %v805 = vadd.s32 %v800, 40
      %v806 = vadd.s32 %v800, 48
      %v807 = vadd.s32 %v800, 56
      %vm808 = vcmp.lt.s32.totalorder %v800, 49
      %vm809 = vcmp.lt.s32.totalorder %v801, 49
      %vm810 = vcmp.lt.s32.totalorder %v802, 49
      %vm811 = vcmp.lt.s32.totalorder %v803, 49
      %vm812 = vcmp.lt.s32.totalorder %v804, 49
      %vm813 = vcmp.lt.s32.totalorder %v805, 49
      %vm814 = vcmp.lt.s32.totalorder %v806, 49
      %vm815 = vcmp.lt.s32.totalorder %v807, 49
      %v816 = vsel %vm808, %v769, 0.0
      %v817 = vsel %vm809, %v772, 0.0
      %v818 = vsel %vm810, %v777, 0.0
      %v819 = vsel %vm811, %v780, 0.0
      %v820 = vsel %vm812, %v785, 0.0
      %v821 = vsel %vm813, %v788, 0.0
      %v822 = vsel %vm814, %v793, 0.0
      %v823 = vsel %vm815, %v796, 0.0
      %v824 = vadd.f32 %v816, %v817
      %v825 = vadd.f32 %v824, %v818
      %v826 = vadd.f32 %v825, %v819
      %v827 = vadd.f32 %v826, %v820
      %v828 = vadd.f32 %v827, %v821
      %v829 = vadd.f32 %v828, %v822
      %v830 = vadd.f32 %v829, %v823
      %v831 = vrot.slane %v830, 4
      %v832 = vadd.f32 %v830, %v831
      %v833 = vrot.slane %v832, 2
      %v834 = vadd.f32 %v832, %v833
      %v835 = vrot.slane %v834, 1
      %v836 = vadd.f32 %v834, %v835
      %v837 = vmul.f32 %v836, 0.020408163
      %v838 = vsub.f32 %v769, %v837
      %v839 = vsub.f32 %v772, %v837
      %v840 = vsub.f32 %v777, %v837
      %v841 = vsub.f32 %v780, %v837
      %v842 = vsub.f32 %v785, %v837
      %v843 = vsub.f32 %v788, %v837
      %v844 = vsub.f32 %v793, %v837
      %v845 = vsub.f32 %v796, %v837
      %v846 = vsel %vm808, %v838, 0.0
      %v847 = vsel %vm809, %v839, 0.0
      %v848 = vsel %vm810, %v840, 0.0
      %v849 = vsel %vm811, %v841, 0.0
      %v850 = vsel %vm812, %v842, 0.0
      %v851 = vsel %vm813, %v843, 0.0
      %v852 = vsel %vm814, %v844, 0.0
      %v853 = vsel %vm815, %v845, 0.0
      %v854 = vmul.f32 %v846, %v846
      %v855 = vmul.f32 %v847, %v847
      %v856 = vmul.f32 %v848, %v848
      %v857 = vmul.f32 %v849, %v849
      %v858 = vmul.f32 %v850, %v850
      %v859 = vmul.f32 %v851, %v851
      %v860 = vmul.f32 %v852, %v852
      %v861 = vmul.f32 %v853, %v853
      %v862 = vadd.f32 %v854, %v855
      %v863 = vadd.f32 %v862, %v856
      %v864 = vadd.f32 %v863, %v857
      %v865 = vadd.f32 %v864, %v858
      %v866 = vadd.f32 %v865, %v859
      %v867 = vadd.f32 %v866, %v860
      %v868 = vadd.f32 %v867, %v861
      %v869 = vrot.slane %v868, 4
      %v870 = vadd.f32 %v868, %v869
      %v871 = vrot.slane %v870, 2
      %v872 = vadd.f32 %v870, %v871
      %v873 = vrot.slane %v872, 1
      %v874 = vadd.f32 %v872, %v873
      %v875 = vmul.f32 %v874, 0.020408163
      %v876 = vadd.f32 %v875, 1e-05
      %v877 = vrsqrt.pop %v876
      %v878 = vmul.f32 %v838, %v877
      %v879 = vmul.f32 %v839, %v877
      %v880 = vmul.f32 %v840, %v877
      %v881 = vmul.f32 %v841, %v877
      %v882 = vmul.f32 %v842, %v877
      %v883 = vmul.f32 %v843, %v877
      %v884 = vmul.f32 %v844, %v877
      %v885 = vmul.f32 %v845, %v877
      %vm886 = vcmp.gt.f32.partialorder %v878, 0.0
      %vm887 = vcmp.gt.f32.partialorder %v879, 0.0
      %vm888 = vcmp.gt.f32.partialorder %v880, 0.0
      %vm889 = vcmp.gt.f32.partialorder %v881, 0.0
      %vm890 = vcmp.gt.f32.partialorder %v882, 0.0
      %vm891 = vcmp.gt.f32.partialorder %v883, 0.0
      %vm892 = vcmp.gt.f32.partialorder %v884, 0.0
      %vm893 = vcmp.gt.f32.partialorder %v885, 0.0
      %v894 = vmul.f32 %v878, 0.2
      %v895 = vmul.f32 %v879, 0.2
      %v896 = vmul.f32 %v880, 0.2
      %v897 = vmul.f32 %v881, 0.2
      %v898 = vmul.f32 %v882, 0.2
      %v899 = vmul.f32 %v883, 0.2
      %v900 = vmul.f32 %v884, 0.2
      %v901 = vmul.f32 %v885, 0.2
      %v902 = vsel %vm886, %v878, %v894
      %v903 = vsel %vm887, %v879, %v895
      %v904 = vsel %vm888, %v880, %v896
      %v905 = vsel %vm889, %v881, %v897
      %v906 = vsel %vm890, %v882, %v898
      %v907 = vsel %vm891, %v883, %v899
      %v908 = vsel %vm892, %v884, %v900
      %v909 = vsel %vm893, %v885, %v901
      %910 = vst [vmem:[%s170] sm:$0xff] %v902
      %911 = vst [vmem:[%s170 + $0x8] sm:$0xff] %v903
      %912 = vst [vmem:[%s170 + $0x10] sm:$0xff] %v904
      %913 = vst [vmem:[%s170 + $0x18] sm:$0xff] %v905
      %914 = vst [vmem:[%s170 + $0x20] sm:$0xff] %v906
      %915 = vst [vmem:[%s170 + $0x28] sm:$0xff] %v907
      %916 = vst [vmem:[%s170 + $0x30] sm:$0xff] %v908
      %917 = vst [vmem:[%s170 + $0x38] sm:$0xff] %v909
      %p918 = scmp.lt.s32.totalorder %s14, 1
      %s919 = scalar_select %p918, %s14, 1
      %s920 = smul.addr %s919, 8
      %s921 = smul.addr %s920, 8
      %s922 = scalar_lea.vmem %s3, %s921
      // Predicated region
      $region33: #{dis_forward.6} parent=31 // pred_check
        %p923 = pneg %p100
      $region34: #{dis_forward.6} parent=31 // pred_check_branch
        %925 = sbr.rel (%p923) target = $region36
      $region35: #{dis_forward.6} parent=31 // pred_region
        _
      $region36: #{dis_forward.6} parent=31 // pred_fallthru
        _
    $region32: #{dis_forward.6} parent=5 // pred_fallthru
      _
    %p926 = scmp.le.s32.totalorder 2, %s9
    // Predicated region
    $region37: #{dis_forward.6} parent=5 // pred_check
      %p927 = pneg %p926
    $region38: #{dis_forward.6} parent=5 // pred_check_branch
      %929 = sbr.rel (%p927) target = $region40
    $region39: #{dis_forward.6} parent=5 // pred_region
      %s930 = ssub.s32 %s9, 2
      // Predicated region
      $region41: #{dis_forward.6} parent=39 // pred_check
        %p931 = pneg %p106
      $region42: #{dis_forward.6} parent=39 // pred_check_branch
        %933 = sbr.rel (%p931) target = $region44
      $region43: #{dis_forward.6} parent=39 // pred_region
        %p934 = scmp.lt.s32.totalorder %s15, 1
        %s935 = scalar_select %p934, %s15, 1
        %s936 = smul.addr %s935, 8
        %s937 = smul.addr %s936, 8
        %s938 = scalar_lea.vmem %s3, %s937
      $region44: #{dis_forward.6} parent=39 // pred_fallthru
        _
    $region40: #{dis_forward.6} parent=5 // pred_fallthru
      _
  $region6: #{dis_forward.6} parent=0 // loop_footer
    %s13 = sadd.s32 1, %s9
  $region7: #{dis_forward.6} parent=0 // loop_footer_branch
    %8 = sbr.rel target = $region3
  $region8: #{dis_forward.6} parent=0 // loop_exit
    _

// kernel: dis_forward.9
$region0: #{dis_forward.9}
  #allocation0 [shape = 'u32[]', space=smem, size = 0x4, offset = 0x4, fixed_abs, tag = 'smem constant byte address 0x4 - core index']
  #allocation1 [shape = 'u32[144,128]{1,0:T(1,128)}', space=vmem, size = 0x12000, scoped, tag = 'internal scratch']
  %s0 = inlined_call_operand.vmem [shape: bf16[24,64], index: 0, kind: input, shape index: {}]
  %s1 = inlined_call_operand.vmem [shape: bf16[64,128], index: 1, kind: input, shape index: {}]
  %s2 = inlined_call_operand.vmem [shape: f32[1,128], index: 2, kind: input, shape index: {}]
  %s3 = inlined_call_operand.vmem [shape: f32[24,128], index: 3, kind: output, shape index: {}]
  %s4 = sld [smem:[#allocation0]]
  $region22: #{dis_forward.9} parent=0
    _
  %s6 = ssub.s32 1, %s4
  %s7 = scalar_select 0, %s6, %s4
  // Predicated region
  $region2: #{dis_forward.9} parent=0 // pred_check
    _
  $region3: #{dis_forward.9} parent=0 // pred_check_branch
    %9 = sbr.rel (0) target = $region5
  $region4: #{dis_forward.9} parent=0 // pred_region
    _
  $region5: #{dis_forward.9} parent=0 // pred_fallthru
    _
  // Predicated region
  $region6: #{dis_forward.9} parent=0 // pred_check
    _
  $region7: #{dis_forward.9} parent=0 // pred_check_branch
    %11 = sbr.rel (0) target = $region9
  $region8: #{dis_forward.9} parent=0 // pred_region
    _
  $region9: #{dis_forward.9} parent=0 // pred_fallthru
    _
  // Predicated region
  $region10: #{dis_forward.9} parent=0 // pred_check
    _
  $region11: #{dis_forward.9} parent=0 // pred_check_branch
    %13 = sbr.rel (0) target = $region13
  $region12: #{dis_forward.9} parent=0 // pred_region
    _
  $region13: #{dis_forward.9} parent=0 // pred_fallthru
    _
  %v15 = vld [vmem:[%s0] sm:$0xf]
  %v16 = vld [vmem:[%s0 + $0x4] sm:$0xf]
  %v17 = vld [vmem:[%s0 + $0x8] sm:$0xf]
  %v18 = vld [vmem:[%s1] sm:$0xf]
  %v19 = vld [vmem:[%s1 + $0x4] sm:$0xf]
  %v20 = vld [vmem:[%s1 + $0x8] sm:$0xf]
  %v21 = vld [vmem:[%s1 + $0xc] sm:$0xf]
  %v22 = vld [vmem:[%s1 + $0x10] sm:$0xf]
  %v23 = vld [vmem:[%s1 + $0x14] sm:$0xf]
  %v24 = vld [vmem:[%s1 + $0x18] sm:$0xf]
  %v25 = vld [vmem:[%s1 + $0x1c] sm:$0xf]
  %v26 = vld [vmem:[%s2] sm:$0x1]
  %v28 = vlaneseq
  %v29 = vshrl.u32 %v28, 7
  %v30 = vsub.s32 0, %v29
  %v31 = vrot.slane %v26, %v30
  %v36 = vunpack.c.l.b16 %v15
  %v37 = vunpack.c.l.b16 %v16
  %v38 = vunpack.c.l.b16 %v17
  %v39 = vpack.c.b16 %v37, %v36
  %v40 = vpack.c.b16 %v38, %v38
  %v49 = vunpack.c.l.b16 %v18
  %v50 = vunpack.c.l.b16 %v19
  %v51 = vunpack.c.l.b16 %v20
  %v52 = vunpack.c.l.b16 %v21
  %v53 = vunpack.c.l.b16 %v22
  %v54 = vunpack.c.l.b16 %v23
  %v55 = vunpack.c.l.b16 %v24
  %v56 = vunpack.c.l.b16 %v25
  %v57 = vpack.c.b16 %v50, %v49
  %v58 = vpack.c.b16 %v52, %v51
  %v59 = vpack.c.b16 %v54, %v53
  %v60 = vpack.c.b16 %v56, %v55
  %vm65 = vcmask 523264
  %v67 = vsel %vm65, %v39, 0
  %v70 = vsel %vm65, %v40, 0
  %72 = vmatprep.subr.bf16.mxu0 0
  %73 = vmatpush1.bf16.msra.mxu0 %v57
  %74 = vmatprep.subr.bf16.mxu0 0
  %75 = vmatpush1.bf16.msra.mxu0 %v58
  %76 = vmatprep.subr.bf16.mxu0 0
  %77 = vmatpush1.bf16.msra.mxu0 %v59
  %78 = vmatprep.subr.bf16.mxu0 0
  %79 = vmatpush1.bf16.msra.mxu0 %v60
  %80 = vmatprep.subr.bf16.mxu0 0
  %81 = vmatpush1.bf16.msra.mxu0 0
  %82 = vmatprep.subr.bf16.mxu0 0
  %83 = vmatpush1.bf16.msra.mxu0 0
  %84 = vmatprep.subr.bf16.mxu0 0
  %85 = vmatpush1.bf16.msra.mxu0 0
  %86 = vmatprep.subr.bf16.mxu0 0
  %87 = vmatpush1.bf16.msra.mxu0 0
  %88 = vmatprep.subr.bf16.mxu0 0
  %89 = vmatpush1.bf16.msra.mxu0 0
  %90 = vmatprep.subr.bf16.mxu0 0
  %91 = vmatpush1.bf16.msra.mxu0 0
  %92 = vmatprep.subr.bf16.mxu0 0
  %93 = vmatpush1.bf16.msra.mxu0 0
  %94 = vmatprep.subr.bf16.mxu0 0
  %95 = vmatpush1.bf16.msra.mxu0 0
  %96 = vmatprep.subr.bf16.mxu0 0
  %97 = vmatpush1.bf16.msra.mxu0 0
  %98 = vmatprep.subr.bf16.mxu0 0
  %99 = vmatpush1.bf16.msra.mxu0 0
  %100 = vmatprep.subr.bf16.mxu0 0
  %101 = vmatpush1.bf16.msra.mxu0 0
  %102 = vmatprep.subr.bf16.mxu0 0
  %103 = vmatpush1.bf16.msra.mxu0 0
  %104 = vmatprep.mubr.bf16.mxu0 0
  %105 = vmatmul.mubr.bf16.gmra.mrb[0].mxu0 %v67
  %v106 = vpop.f32.mrb[0].mxu0
  %v107 = vadd.f32 %v31, %v106
  %v108 = vpop.f32.mrb[0].mxu0
  %v109 = vpop.f32.mrb[0].mxu0
  %v110 = vadd.f32 %v31, %v109
  %v111 = vpop.f32.mrb[0].mxu0
  %112 = vmatprep.mubr.bf16.mxu0 0
  %113 = vmatmul.mubr.bf16.gmra.mrb[0].mxu0 %v70
  %v114 = vpop.f32.mrb[0].mxu0
  %v115 = vadd.f32 %v31, %v114
  %v116 = vpop.f32.mrb[0].mxu0
  %v117 = vpop.f32.mrb[0].mxu0
  %v118 = vpop.f32.mrb[0].mxu0
  %119 = vdwg.mxu0
  %v120 = vsub.f32 0.0, %v107
  %v121 = vsub.f32 0.0, %v110
  %v122 = vsub.f32 0.0, %v115
  %v123 = vmul.f32 %v120, 1.442695
  %v124 = vpow.pop %v123
  %v125 = vmul.f32 %v121, 1.442695
  %v126 = vpow.pop %v125
  %v127 = vmul.f32 %v122, 1.442695
  %v128 = vpow.pop %v127
  %v129 = vadd.f32 %v124, 1.0
  %v130 = vadd.f32 %v126, 1.0
  %v131 = vadd.f32 %v128, 1.0
  %v132 = vrcp.pop %v129
  %v133 = vmul.f32 1.0, %v132
  %v134 = vrcp.pop %v130
  %v135 = vmul.f32 1.0, %v134
  %v136 = vrcp.pop %v131
  %v137 = vmul.f32 1.0, %v136
  %138 = vst [vmem:[%s3] sm:$0xff] %v133
  %139 = vst [vmem:[%s3 + $0x8] sm:$0xff] %v135
  %140 = vst [vmem:[%s3 + $0x10] sm:$0xff] %v137
  // Predicated region
  $region14: #{dis_forward.9} parent=0 // pred_check
    _
  $region15: #{dis_forward.9} parent=0 // pred_check_branch
    %142 = sbr.rel (0) target = $region17
  $region16: #{dis_forward.9} parent=0 // pred_region
    _
  $region17: #{dis_forward.9} parent=0 // pred_fallthru
    _
  // Predicated region
  $region18: #{dis_forward.9} parent=0 // pred_check
    _
  $region19: #{dis_forward.9} parent=0 // pred_check_branch
    %144 = sbr.rel (0) target = $region21
  $region20: #{dis_forward.9} parent=0 // pred_region
    _
  $region21: #{dis_forward.9} parent=0 // pred_fallthru
    _

// kernel: dis_forward.7
$region0: #{dis_forward.7}
  #allocation0 [shape = 'u32[]', space=smem, size = 0x4, offset = 0x4, fixed_abs, tag = 'smem constant byte address 0x4 - core index']
  #allocation1 [shape = 'u32[144,128]{1,0:T(1,128)}', space=vmem, size = 0x12000, scoped, tag = 'internal scratch']
  %s0 = inlined_call_operand.vmem [shape: bf16[2,16,576], index: 0, kind: input, shape index: {}]
  %s1 = inlined_call_operand.vmem [shape: bf16[576,128], index: 1, kind: input, shape index: {}]
  %s2 = inlined_call_operand.vmem [shape: f32[1,128], index: 2, kind: input, shape index: {}]
  %s3 = inlined_call_operand.vmem [shape: f32[2,16,128], index: 3, kind: output, shape index: {}]
  %s4 = sld [smem:[#allocation0]]
  $region45: #{dis_forward.7} parent=0
    _
  %s6 = ssub.s32 1, %s4
  %s7 = scalar_select 0, %s6, %s4
  loop: start=0, step=1, limit=4
  $region2: #{dis_forward.7} parent=0 // loop_pre_header
    _
  $region3: #{dis_forward.7} parent=0 // loop_header
    %s9 = sphi 0, %s13
    %p10 = scmp.ge.s32.totalorder %s9, 4
    %s19 = sphi 0, %s21
    %s22 = sphi 0, %s19
    %s23 = sphi 0, %s22
    %s39 = sphi 0, %s23
    %s43 = sphi 0, %s43
    %s45 = sphi 0, %s43
    %s46 = sphi 0, %s45
    %s60 = sphi 0, %s46
    %s64 = sphi 0, %s64
    %s66 = sphi 0, %s64
    %s67 = sphi 0, %s66
    %s81 = sphi 0, %s67
    %s87 = sphi 0, %s89
    %s90 = sphi 0, %s87
    %s91 = sphi 0, %s90
    %s107 = sphi 0, %s91
  $region4: #{dis_forward.7} parent=0 // loop_header_branch
    %12 = sbr.rel (%p10) target = $region8
  $region5: #{dis_forward.7} parent=0 // loop_body
    %s14 = ssub.s32 %s9, 1
    %s15 = ssub.s32 %s9, 2
    %s16 = sadd.s32 %s9, 1
    %s17 = ssub.s32 %s9, %s16
    %p18 = scmp.eq.s32.totalorder %s17, 0
    %s20 = sadd.s32 %s19, 1
    %s21 = scalar_select %p18, %s19, %s20
    %p24 = pneg %p18
    %p25 = scmp.eq.s32.totalorder %s9, 1
    %p26 = por %p24, %p25
    %p27 = scmp.ne.s32.totalorder %s19, %s22
    %p28 = scmp.eq.s32.totalorder %s9, 0
    %p29 = por %p27, %p28
    %p30 = scmp.ne.s32.totalorder %s19, %s22
    %p31 = scmp.eq.s32.totalorder %s14, 1
    %p32 = por %p30, %p31
    %p33 = scmp.ne.s32.totalorder %s22, %s23
    %p34 = scmp.eq.s32.totalorder %s14, 0
    %p35 = por %p33, %p34
    %p36 = scmp.ne.s32.totalorder %s22, %s23
    %p37 = scmp.eq.s32.totalorder %s15, 1
    %p38 = por %p36, %p37
    %p40 = scmp.ne.s32.totalorder %s23, %s39
    %p41 = scmp.eq.s32.totalorder %s15, 0
    %p42 = por %p40, %p41
    %s44 = sadd.s32 %s43, 1
    %p47 = scmp.eq.s32.totalorder %s9, 1
    %p48 = scmp.ne.s32.totalorder %s43, %s45
    %p49 = scmp.eq.s32.totalorder %s9, 0
    %p50 = por %p48, %p49
    %p51 = scmp.ne.s32.totalorder %s43, %s45
    %p52 = scmp.eq.s32.totalorder %s14, 1
    %p53 = por %p51, %p52
    %p54 = scmp.ne.s32.totalorder %s45, %s46
    %p55 = scmp.eq.s32.totalorder %s14, 0
    %p56 = por %p54, %p55
    %p57 = scmp.ne.s32.totalorder %s45, %s46
    %p58 = scmp.eq.s32.totalorder %s15, 1
    %p59 = por %p57, %p58
    %p61 = scmp.ne.s32.totalorder %s46, %s60
    %p62 = scmp.eq.s32.totalorder %s15, 0
    %p63 = por %p61, %p62
    %s65 = sadd.s32 %s64, 1
    %p68 = scmp.eq.s32.totalorder %s9, 1
    %p69 = scmp.ne.s32.totalorder %s64, %s66
    %p70 = scmp.eq.s32.totalorder %s9, 0
    %p71 = por %p69, %p70
    %p72 = scmp.ne.s32.totalorder %s64, %s66
    %p73 = scmp.eq.s32.totalorder %s14, 1
    %p74 = por %p72, %p73
    %p75 = scmp.ne.s32.totalorder %s66, %s67
    %p76 = scmp.eq.s32.totalorder %s14, 0
    %p77 = por %p75, %p76
    %p78 = scmp.ne.s32.totalorder %s66, %s67
    %p79 = scmp.eq.s32.totalorder %s15, 1
    %p80 = por %p78, %p79
    %p82 = scmp.ne.s32.totalorder %s67, %s81
    %p83 = scmp.eq.s32.totalorder %s15, 0
    %p84 = por %p82, %p83
    %s85 = ssub.s32 %s9, %s16
    %p86 = scmp.eq.s32.totalorder %s85, 0
    %s88 = sadd.s32 %s87, 1
    %s89 = scalar_select %p86, %s87, %s88
    %p92 = pneg %p86
    %p93 = scmp.eq.s32.totalorder %s9, 1
    %p94 = por %p92, %p93
    %p95 = scmp.ne.s32.totalorder %s87, %s90
    %p96 = scmp.eq.s32.totalorder %s9, 0
    %p97 = por %p95, %p96
    %p98 = scmp.ne.s32.totalorder %s87, %s90
    %p99 = scmp.eq.s32.totalorder %s14, 1
    %p100 = por %p98, %p99
    %p101 = scmp.ne.s32.totalorder %s90, %s91
    %p102 = scmp.eq.s32.totalorder %s14, 0
    %p103 = por %p101, %p102
    %p104 = scmp.ne.s32.totalorder %s90, %s91
    %p105 = scmp.eq.s32.totalorder %s15, 1
    %p106 = por %p104, %p105
    %p108 = scmp.ne.s32.totalorder %s91, %s107
    %p109 = scmp.eq.s32.totalorder %s15, 0
    %p110 = por %p108, %p109
    %p111 = scmp.le.s32.totalorder 1, %s9
    %p112 = scmp.lt.s32.totalorder %s9, 3
    %p113 = pnand %p111, %p112
    %p114 = pneg %p113
    // Predicated region
    $region9: #{dis_forward.7} parent=5 // pred_check
      _
    $region10: #{dis_forward.7} parent=5 // pred_check_branch
      %116 = sbr.rel (%p113) target = $region12
    $region11: #{dis_forward.7} parent=5 // pred_region
      %s117 = ssub.s32 %s9, 1
      // Predicated region
      $region13: #{dis_forward.7} parent=11 // pred_check
        %p118 = pneg %p56
      $region14: #{dis_forward.7} parent=11 // pred_check_branch
        %120 = sbr.rel (%p118) target = $region16
      $region15: #{dis_forward.7} parent=11 // pred_region
        _
      $region16: #{dis_forward.7} parent=11 // pred_fallthru
        _
      // Predicated region
      $region17: #{dis_forward.7} parent=11 // pred_check
        %p121 = pneg %p77
      $region18: #{dis_forward.7} parent=11 // pred_check_branch
        %123 = sbr.rel (%p121) target = $region20
      $region19: #{dis_forward.7} parent=11 // pred_region
        _
      $region20: #{dis_forward.7} parent=11 // pred_fallthru
        _
    $region12: #{dis_forward.7} parent=5 // pred_fallthru
      _
    %p124 = scmp.lt.s32.totalorder %s9, 2
    // Predicated region
    $region21: #{dis_forward.7} parent=5 // pred_check
      %p125 = pneg %p124
    $region22: #{dis_forward.7} parent=5 // pred_check_branch
      %127 = sbr.rel (%p125) target = $region24
    $region23: #{dis_forward.7} parent=5 // pred_region
      // Predicated region
      $region25: #{dis_forward.7} parent=23 // pred_check
        %p128 = pneg %p29
      $region26: #{dis_forward.7} parent=23 // pred_check_branch
        %130 = sbr.rel (%p128) target = $region28
      $region27: #{dis_forward.7} parent=23 // pred_region
        %p131 = scmp.lt.s32.totalorder %s9, 1
        %s132 = scalar_select %p131, %s9, 1
        %s133 = smul.addr %s132, 10
        %s134 = smul.addr %s133, 4
        %s135 = scalar_lea.vmem %s0, %s134
      $region28: #{dis_forward.7} parent=23 // pred_fallthru
        _
    $region24: #{dis_forward.7} parent=5 // pred_fallthru
      _
    %p136 = scmp.le.s32.totalorder 1, %s9
    %p137 = scmp.lt.s32.totalorder %s9, 3
    %p138 = pnand %p136, %p137
    %p139 = pneg %p138
    // Predicated region
    $region29: #{dis_forward.7} parent=5 // pred_check
      _
    $region30: #{dis_forward.7} parent=5 // pred_check_branch
      %141 = sbr.rel (%p138) target = $region32
    $region31: #{dis_forward.7} parent=5 // pred_region
      %s142 = ssub.s32 %s9, 1
      %p143 = scmp.lt.s32.totalorder %s14, 1
      %s144 = scalar_select %p143, %s14, 1
      %s145 = smul.addr %s144, 10
      %s146 = smul.addr %s145, 4
      %s147 = scalar_lea.vmem %s0, %s146
      %p148 = pneg %p35
      %p149 = pneg %p32
      %p150 = pneg %p56
      %p151 = pneg %p53
      %p152 = pneg %p77
      %p153 = pneg %p74
      %p154 = pneg %p103
      %p155 = pneg %p100
      %p156 = scmp.lt.s32.totalorder %s14, 1
      %s157 = scalar_select %p156, %s14, 1
      %s158 = smul.addr %s157, 2
      %s159 = smul.addr %s158, 8
      %s160 = scalar_lea.vmem %s3, %s159
      %p161 = scmp.lt.s32.totalorder %s14, 1
      %s162 = scalar_select %p161, %s14, 1
      %s163 = smul.addr %s162, 10
      %s164 = smul.addr %s163, 4
      %s165 = scalar_lea.vmem %s0, %s164
      %p166 = scmp.lt.s32.totalorder %s14, 1
      %s167 = scalar_select %p166, %s14, 1
      %s168 = smul.addr %s167, 2
      %s169 = smul.addr %s168, 8
      %s170 = scalar_lea.vmem %s3, %s169
      %v172 = vld [vmem:[%s165] sm:$0xff]
      %v173 = vld [vmem:[%s165 + $0x8] sm:$0xff]
      %v174 = vld [vmem:[%s165 + $0x10] sm:$0xf]
      %v175 = vld [vmem:[%s165 + $0x14] sm:$0xff]
      %v176 = vld [vmem:[%s165 + $0x1c] sm:$0xff]
      %v177 = vld [vmem:[%s165 + $0x24] sm:$0xf]
      %v178 = vld [vmem:[%s1] sm:$0xf]
      %v179 = vld [vmem:[%s1 + $0x4] sm:$0xf]
      %v180 = vld [vmem:[%s1 + $0x8] sm:$0xf]
      %v181 = vld [vmem:[%s1 + $0xc] sm:$0xf]
      %v182 = vld [vmem:[%s1 + $0x10] sm:$0xf]
      %v183 = vld [vmem:[%s1 + $0x14] sm:$0xf]
      %v184 = vld [vmem:[%s1 + $0x18] sm:$0xf]
      %v185 = vld [vmem:[%s1 + $0x1c] sm:$0xf]
      %v186 = vld [vmem:[%s1 + $0x20] sm:$0xf]
      %v187 = vld [vmem:[%s1 + $0x24] sm:$0xf]
      %v188 = vld [vmem:[%s1 + $0x28] sm:$0xf]
      %v189 = vld [vmem:[%s1 + $0x2c] sm:$0xf]
      %v190 = vld [vmem:[%s1 + $0x30] sm:$0xf]
      %v191 = vld [vmem:[%s1 + $0x34] sm:$0xf]
      %v192 = vld [vmem:[%s1 + $0x38] sm:$0xf]
      %v193 = vld [vmem:[%s1 + $0x3c] sm:$0xf]
      %v194 = vld [vmem:[%s1 + $0x40] sm:$0xf]
      %v195 = vld [vmem:[%s1 + $0x44] sm:$0xf]
      %v196 = vld [vmem:[%s1 + $0x48] sm:$0xf]
      %v197 = vld [vmem:[%s1 + $0x4c] sm:$0xf]
      %v198 = vld [vmem:[%s1 + $0x50] sm:$0xf]
      %v199 = vld [vmem:[%s1 + $0x54] sm:$0xf]
      %v200 = vld [vmem:[%s1 + $0x58] sm:$0xf]
      %v201 = vld [vmem:[%s1 + $0x5c] sm:$0xf]
      %v202 = vld [vmem:[%s1 + $0x60] sm:$0xf]
      %v203 = vld [vmem:[%s1 + $0x64] sm:$0xf]
      %v204 = vld [vmem:[%s1 + $0x68] sm:$0xf]
      %v205 = vld [vmem:[%s1 + $0x6c] sm:$0xf]
      %v206 = vld [vmem:[%s1 + $0x70] sm:$0xf]
      %v207 = vld [vmem:[%s1 + $0x74] sm:$0xf]
      %v208 = vld [vmem:[%s1 + $0x78] sm:$0xf]
      %v209 = vld [vmem:[%s1 + $0x7c] sm:$0xf]
      %v210 = vld [vmem:[%s1 + $0x80] sm:$0xf]
      %v211 = vld [vmem:[%s1 + $0x84] sm:$0xf]
      %v212 = vld [vmem:[%s1 + $0x88] sm:$0xf]
      %v213 = vld [vmem:[%s1 + $0x8c] sm:$0xf]
      %v214 = vld [vmem:[%s1 + $0x90] sm:$0xf]
      %v215 = vld [vmem:[%s1 + $0x94] sm:$0xf]
      %v216 = vld [vmem:[%s1 + $0x98] sm:$0xf]
      %v217 = vld [vmem:[%s1 + $0x9c] sm:$0xf]
      %v218 = vld [vmem:[%s1 + $0xa0] sm:$0xf]
      %v219 = vld [vmem:[%s1 + $0xa4] sm:$0xf]
      %v220 = vld [vmem:[%s1 + $0xa8] sm:$0xf]
      %v221 = vld [vmem:[%s1 + $0xac] sm:$0xf]
      %v222 = vld [vmem:[%s1 + $0xb0] sm:$0xf]
      %v223 = vld [vmem:[%s1 + $0xb4] sm:$0xf]
      %v224 = vld [vmem:[%s1 + $0xb8] sm:$0xf]
      %v225 = vld [vmem:[%s1 + $0xbc] sm:$0xf]
      %v226 = vld [vmem:[%s1 + $0xc0] sm:$0xf]
      %v227 = vld [vmem:[%s1 + $0xc4] sm:$0xf]
      %v228 = vld [vmem:[%s1 + $0xc8] sm:$0xf]
      %v229 = vld [vmem:[%s1 + $0xcc] sm:$0xf]
      %v230 = vld [vmem:[%s1 + $0xd0] sm:$0xf]
      %v231 = vld [vmem:[%s1 + $0xd4] sm:$0xf]
      %v232 = vld [vmem:[%s1 + $0xd8] sm:$0xf]
      %v233 = vld [vmem:[%s1 + $0xdc] sm:$0xf]
      %v234 = vld [vmem:[%s1 + $0xe0] sm:$0xf]
      %v235 = vld [vmem:[%s1 + $0xe4] sm:$0xf]
      %v236 = vld [vmem:[%s1 + $0xe8] sm:$0xf]
      %v237 = vld [vmem:[%s1 + $0xec] sm:$0xf]
      %v238 = vld [vmem:[%s1 + $0xf0] sm:$0xf]
      %v239 = vld [vmem:[%s1 + $0xf4] sm:$0xf]
      %v240 = vld [vmem:[%s1 + $0xf8] sm:$0xf]
      %v241 = vld [vmem:[%s1 + $0xfc] sm:$0xf]
      %v242 = vld [vmem:[%s1 + $0x100] sm:$0xf]
      %v243 = vld [vmem:[%s1 + $0x104] sm:$0xf]
      %v244 = vld [vmem:[%s1 + $0x108] sm:$0xf]
      %v245 = vld [vmem:[%s1 + $0x10c] sm:$0xf]
      %v246 = vld [vmem:[%s1 + $0x110] sm:$0xf]
      %v247 = vld [vmem:[%s1 + $0x114] sm:$0xf]
      %v248 = vld [vmem:[%s1 + $0x118] sm:$0xf]
      %v249 = vld [vmem:[%s1 + $0x11c] sm:$0xf]
      %v250 = vld [vmem:[%s2] sm:$0x1]
      %v252 = vlaneseq
      %v253 = vshrl.u32 %v252, 7
      %v254 = vsub.s32 0, %v253
      %v255 = vrot.slane %v250, %v254
      %v263 = vunpack.c.l.b16 %v172
      %v264 = vunpack.c.h.b16 %v172
      %v265 = vunpack.c.l.b16 %v173
      %v266 = vunpack.c.h.b16 %v173
      %v267 = vunpack.c.l.b16 %v174
      %v268 = vunpack.c.l.b16 %v175
      %v269 = vunpack.c.h.b16 %v175
      %v270 = vunpack.c.l.b16 %v176
      %v271 = vunpack.c.h.b16 %v176
      %v272 = vunpack.c.l.b16 %v177
      %v273 = vpack.c.b16 %v268, %v263
      %v274 = vpack.c.b16 %v269, %v264
      %v275 = vpack.c.b16 %v270, %v265
      %v276 = vpack.c.b16 %v271, %v266
      %v277 = vpack.c.b16 %v272, %v267
      %v354 = vunpack.c.l.b16 %v178
      %v355 = vunpack.c.l.b16 %v179
      %v356 = vunpack.c.l.b16 %v180
      %v357 = vunpack.c.l.b16 %v181
      %v358 = vunpack.c.l.b16 %v182
      %v359 = vunpack.c.l.b16 %v183
      %v360 = vunpack.c.l.b16 %v184
      %v361 = vunpack.c.l.b16 %v185
      %v362 = vunpack.c.l.b16 %v186
      %v363 = vunpack.c.l.b16 %v187
      %v364 = vunpack.c.l.b16 %v188
      %v365 = vunpack.c.l.b16 %v189
      %v366 = vunpack.c.l.b16 %v190
      %v367 = vunpack.c.l.b16 %v191
      %v368 = vunpack.c.l.b16 %v192
      %v369 = vunpack.c.l.b16 %v193
      %v370 = vunpack.c.l.b16 %v194
      %v371 = vunpack.c.l.b16 %v195
      %v372 = vunpack.c.l.b16 %v196
      %v373 = vunpack.c.l.b16 %v197
      %v374 = vunpack.c.l.b16 %v198
      %v375 = vunpack.c.l.b16 %v199
      %v376 = vunpack.c.l.b16 %v200
      %v377 = vunpack.c.l.b16 %v201
      %v378 = vunpack.c.l.b16 %v202
      %v379 = vunpack.c.l.b16 %v203
      %v380 = vunpack.c.l.b16 %v204
      %v381 = vunpack.c.l.b16 %v205
      %v382 = vunpack.c.l.b16 %v206
      %v383 = vunpack.c.l.b16 %v207
      %v384 = vunpack.c.l.b16 %v208
      %v385 = vunpack.c.l.b16 %v209
      %v386 = vunpack.c.l.b16 %v210
      %v387 = vunpack.c.l.b16 %v211
      %v388 = vunpack.c.l.b16 %v212
      %v389 = vunpack.c.l.b16 %v213
      %v390 = vunpack.c.l.b16 %v214
      %v391 = vunpack.c.l.b16 %v215
      %v392 = vunpack.c.l.b16 %v216
      %v393 = vunpack.c.l.b16 %v217
      %v394 = vunpack.c.l.b16 %v218
      %v395 = vunpack.c.l.b16 %v219
      %v396 = vunpack.c.l.b16 %v220
      %v397 = vunpack.c.l.b16 %v221
      %v398 = vunpack.c.l.b16 %v222
      %v399 = vunpack.c.l.b16 %v223
      %v400 = vunpack.c.l.b16 %v224
      %v401 = vunpack.c.l.b16 %v225
      %v402 = vunpack.c.l.b16 %v226
      %v403 = vunpack.c.l.b16 %v227
      %v404 = vunpack.c.l.b16 %v228
      %v405 = vunpack.c.l.b16 %v229
      %v406 = vunpack.c.l.b16 %v230
      %v407 = vunpack.c.l.b16 %v231
      %v408 = vunpack.c.l.b16 %v232
      %v409 = vunpack.c.l.b16 %v233
      %v410 = vunpack.c.l.b16 %v234
      %v411 = vunpack.c.l.b16 %v235
      %v412 = vunpack.c.l.b16 %v236
      %v413 = vunpack.c.l.b16 %v237
      %v414 = vunpack.c.l.b16 %v238
      %v415 = vunpack.c.l.b16 %v239
      %v416 = vunpack.c.l.b16 %v240
      %v417 = vunpack.c.l.b16 %v241
      %v418 = vunpack.c.l.b16 %v242
      %v419 = vunpack.c.l.b16 %v243
      %v420 = vunpack.c.l.b16 %v244
      %v421 = vunpack.c.l.b16 %v245
      %v422 = vunpack.c.l.b16 %v246
      %v423 = vunpack.c.l.b16 %v247
      %v424 = vunpack.c.l.b16 %v248
      %v425 = vunpack.c.l.b16 %v249
      %v426 = vpack.c.b16 %v355, %v354
      %v427 = vpack.c.b16 %v357, %v356
      %v428 = vpack.c.b16 %v359, %v358
      %v429 = vpack.c.b16 %v361, %v360
      %v430 = vpack.c.b16 %v363, %v362
      %v431 = vpack.c.b16 %v365, %v364
      %v432 = vpack.c.b16 %v367, %v366
      %v433 = vpack.c.b16 %v369, %v368
      %v434 = vpack.c.b16 %v371, %v370
      %v435 = vpack.c.b16 %v373, %v372
      %v436 = vpack.c.b16 %v375, %v374
      %v437 = vpack.c.b16 %v377, %v376
      %v438 = vpack.c.b16 %v379, %v378
      %v439 = vpack.c.b16 %v381, %v380
      %v440 = vpack.c.b16 %v383, %v382
      %v441 = vpack.c.b16 %v385, %v384
      %v442 = vpack.c.b16 %v387, %v386
      %v443 = vpack.c.b16 %v389, %v388
      %v444 = vpack.c.b16 %v391, %v390
      %v445 = vpack.c.b16 %v393, %v392
      %v446 = vpack.c.b16 %v395, %v394
      %v447 = vpack.c.b16 %v397, %v396
      %v448 = vpack.c.b16 %v399, %v398
      %v449 = vpack.c.b16 %v401, %v400
      %v450 = vpack.c.b16 %v403, %v402
      %v451 = vpack.c.b16 %v405, %v404
      %v452 = vpack.c.b16 %v407, %v406
      %v453 = vpack.c.b16 %v409, %v408
      %v454 = vpack.c.b16 %v411, %v410
      %v455 = vpack.c.b16 %v413, %v412
      %v456 = vpack.c.b16 %v415, %v414
      %v457 = vpack.c.b16 %v417, %v416
      %v458 = vpack.c.b16 %v419, %v418
      %v459 = vpack.c.b16 %v421, %v420
      %v460 = vpack.c.b16 %v423, %v422
      %v461 = vpack.c.b16 %v425, %v424
      %vm498 = vcmask 523264
      %v500 = vsel %vm498, %v277, 0
      %502 = vmatprep.subr.bf16.mxu0 0
      %503 = vmatpush1.bf16.msra.mxu0 %v426
      %504 = vmatprep.subr.bf16.mxu0 0
      %505 = vmatpush1.bf16.msra.mxu0 %v427
      %506 = vmatprep.subr.bf16.mxu0 0
      %507 = vmatpush1.bf16.msra.mxu0 %v428
      %508 = vmatprep.subr.bf16.mxu0 0
      %509 = vmatpush1.bf16.msra.mxu0 %v429
      %510 = vmatprep.subr.bf16.mxu0 0
      %511 = vmatpush1.bf16.msra.mxu0 %v430
      %512 = vmatprep.subr.bf16.mxu0 0
      %513 = vmatpush1.bf16.msra.mxu0 %v431
      %514 = vmatprep.subr.bf16.mxu0 0
      %515 = vmatpush1.bf16.msra.mxu0 %v432
      %516 = vmatprep.subr.bf16.mxu0 0
      %517 = vmatpush1.bf16.msra.mxu0 %v433
      %518 = vmatprep.subr.bf16.mxu0 0
      %519 = vmatpush1.bf16.msra.mxu0 %v434
      %520 = vmatprep.subr.bf16.mxu0 0
      %521 = vmatpush1.bf16.msra.mxu0 %v435
      %522 = vmatprep.subr.bf16.mxu0 0
      %523 = vmatpush1.bf16.msra.mxu0 %v436
      %524 = vmatprep.subr.bf16.mxu0 0
      %525 = vmatpush1.bf16.msra.mxu0 %v437
      %526 = vmatprep.subr.bf16.mxu0 0
      %527 = vmatpush1.bf16.msra.mxu0 %v438
      %528 = vmatprep.subr.bf16.mxu0 0
      %529 = vmatpush1.bf16.msra.mxu0 %v439
      %530 = vmatprep.subr.bf16.mxu0 0
      %531 = vmatpush1.bf16.msra.mxu0 %v440
      %532 = vmatprep.subr.bf16.mxu0 0
      %533 = vmatpush1.bf16.msra.mxu0 %v441
      %534 = vmatprep.mubr.bf16.mxu0 %v274
      %535 = vmatmul.mubr.bf16.gmra.mrb[0].mxu0 %v273
      %v536 = vpop.f32.mrb[0].mxu0
      %v537 = vadd.f32 %v255, %v536
      %v538 = vpop.f32.mrb[0].mxu0
      %v539 = vpop.f32.mrb[0].mxu0
      %v540 = vadd.f32 %v255, %v539
      %v541 = vpop.f32.mrb[0].mxu0
      %542 = vdwg.mxu0
      %543 = vmatprep.subr.bf16.mxu0 0
      %544 = vmatpush1.bf16.msra.mxu0 %v442
      %545 = vmatprep.subr.bf16.mxu0 0
      %546 = vmatpush1.bf16.msra.mxu0 %v443
      %547 = vmatprep.subr.bf16.mxu0 0
      %548 = vmatpush1.bf16.msra.mxu0 %v444
      %549 = vmatprep.subr.bf16.mxu0 0
      %550 = vmatpush1.bf16.msra.mxu0 %v445
      %551 = vmatprep.subr.bf16.mxu0 0
      %552 = vmatpush1.bf16.msra.mxu0 %v446
      %553 = vmatprep.subr.bf16.mxu0 0
      %554 = vmatpush1.bf16.msra.mxu0 %v447
      %555 = vmatprep.subr.bf16.mxu0 0
      %556 = vmatpush1.bf16.msra.mxu0 %v448
      %557 = vmatprep.subr.bf16.mxu0 0
      %558 = vmatpush1.bf16.msra.mxu0 %v449
      %559 = vmatprep.subr.bf16.mxu0 0
      %560 = vmatpush1.bf16.msra.mxu0 %v450
      %561 = vmatprep.subr.bf16.mxu0 0
      %562 = vmatpush1.bf16.msra.mxu0 %v451
      %563 = vmatprep.subr.bf16.mxu0 0
      %564 = vmatpush1.bf16.msra.mxu0 %v452
      %565 = vmatprep.subr.bf16.mxu0 0
      %566 = vmatpush1.bf16.msra.mxu0 %v453
      %567 = vmatprep.subr.bf16.mxu0 0
      %568 = vmatpush1.bf16.msra.mxu0 %v454
      %569 = vmatprep.subr.bf16.mxu0 0
      %570 = vmatpush1.bf16.msra.mxu0 %v455
      %571 = vmatprep.subr.bf16.mxu0 0
      %572 = vmatpush1.bf16.msra.mxu0 %v456
      %573 = vmatprep.subr.bf16.mxu0 0
      %574 = vmatpush1.bf16.msra.mxu0 %v457
      %575 = vmatprep.mubr.bf16.mxu0 %v276
      %576 = vmatmul.mubr.bf16.gmra.mrb[0].mxu0 %v275
      %v577 = vpop.f32.mrb[0].mxu0
      %v578 = vadd.f32 %v537, %v577
      %v579 = vpop.f32.mrb[0].mxu0
      %v580 = vpop.f32.mrb[0].mxu0
      %v581 = vadd.f32 %v540, %v580
      %v582 = vpop.f32.mrb[0].mxu0
      %583 = vdwg.mxu0
      %584 = vmatprep.subr.bf16.mxu0 0
      %585 = vmatpush1.bf16.msra.mxu0 %v458
      %586 = vmatprep.subr.bf16.mxu0 0
      %587 = vmatpush1.bf16.msra.mxu0 %v459
      %588 = vmatprep.subr.bf16.mxu0 0
      %589 = vmatpush1.bf16.msra.mxu0 %v460
      %590 = vmatprep.subr.bf16.mxu0 0
      %591 = vmatpush1.bf16.msra.mxu0 %v461
      %592 = vmatprep.subr.bf16.mxu0 0
      %593 = vmatpush1.bf16.msra.mxu0 0
      %594 = vmatprep.subr.bf16.mxu0 0
      %595 = vmatpush1.bf16.msra.mxu0 0
      %596 = vmatprep.subr.bf16.mxu0 0
      %597 = vmatpush1.bf16.msra.mxu0 0
      %598 = vmatprep.subr.bf16.mxu0 0
      %599 = vmatpush1.bf16.msra.mxu0 0
      %600 = vmatprep.subr.bf16.mxu0 0
      %601 = vmatpush1.bf16.msra.mxu0 0
      %602 = vmatprep.subr.bf16.mxu0 0
      %603 = vmatpush1.bf16.msra.mxu0 0
      %604 = vmatprep.subr.bf16.mxu0 0
      %605 = vmatpush1.bf16.msra.mxu0 0
      %606 = vmatprep.subr.bf16.mxu0 0
      %607 = vmatpush1.bf16.msra.mxu0 0
      %608 = vmatprep.subr.bf16.mxu0 0
      %609 = vmatpush1.bf16.msra.mxu0 0
      %610 = vmatprep.subr.bf16.mxu0 0
      %611 = vmatpush1.bf16.msra.mxu0 0
      %612 = vmatprep.subr.bf16.mxu0 0
      %613 = vmatpush1.bf16.msra.mxu0 0
      %614 = vmatprep.subr.bf16.mxu0 0
      %615 = vmatpush1.bf16.msra.mxu0 0
      %616 = vmatprep.mubr.bf16.mxu0 0
      %617 = vmatmul.mubr.bf16.gmra.mrb[0].mxu0 %v500
      %v618 = vpop.f32.mrb[0].mxu0
      %v619 = vadd.f32 %v578, %v618
      %v620 = vpop.f32.mrb[0].mxu0
      %v621 = vpop.f32.mrb[0].mxu0
      %v622 = vadd.f32 %v581, %v621
      %v623 = vpop.f32.mrb[0].mxu0
      %624 = vdwg.mxu0
      %v625 = vlaneseq
      %v626 = vshrl.u32 %v625, 7
      %v627 = vadd.s32 %v626, 8
      %vm628 = vcmp.lt.s32.totalorder %v626, 9
      %vm629 = vcmp.lt.s32.totalorder %v627, 9
      %v630 = vsel %vm628, %v619, 0.0
      %v631 = vsel %vm629, %v622, 0.0
      %v632 = vadd.f32 %v630, %v631
      %v633 = vrot.slane %v632, 4
      %v634 = vadd.f32 %v632, %v633
      %v635 = vrot.slane %v634, 2
      %v636 = vadd.f32 %v634, %v635
      %v637 = vrot.slane %v636, 1
      %v638 = vadd.f32 %v636, %v637
      %v639 = vmul.f32 %v638, 0.11111111
      %v640 = vsub.f32 %v619, %v639
      %v641 = vsub.f32 %v622, %v639
      %v642 = vsel %vm628, %v640, 0.0
      %v643 = vsel %vm629, %v641, 0.0
      %v644 = vmul.f32 %v642, %v642
      %v645 = vmul.f32 %v643, %v643
      %v646 = vadd.f32 %v644, %v645
      %v647 = vrot.slane %v646, 4
      %v648 = vadd.f32 %v646, %v647
      %v649 = vrot.slane %v648, 2
      %v650 = vadd.f32 %v648, %v649
      %v651 = vrot.slane %v650, 1
      %v652 = vadd.f32 %v650, %v651
      %v653 = vmul.f32 %v652, 0.11111111
      %v654 = vadd.f32 %v653, 1e-05
      %v655 = vrsqrt.pop %v654
      %v656 = vmul.f32 %v640, %v655
      %v657 = vmul.f32 %v641, %v655
      %vm658 = vcmp.gt.f32.partialorder %v656, 0.0
      %vm659 = vcmp.gt.f32.partialorder %v657, 0.0
      %v660 = vmul.f32 %v656, 0.2
      %v661 = vmul.f32 %v657, 0.2
      %v662 = vsel %vm658, %v656, %v660
      %v663 = vsel %vm659, %v657, %v661
      %664 = vst [vmem:[%s170] sm:$0xff] %v662
      %665 = vst [vmem:[%s170 + $0x8] sm:$0xff] %v663
      %p666 = scmp.lt.s32.totalorder %s14, 1
      %s667 = scalar_select %p666, %s14, 1
      %s668 = smul.addr %s667, 2
      %s669 = smul.addr %s668, 8
      %s670 = scalar_lea.vmem %s3, %s669
      // Predicated region
      $region33: #{dis_forward.7} parent=31 // pred_check
        %p671 = pneg %p100
      $region34: #{dis_forward.7} parent=31 // pred_check_branch
        %673 = sbr.rel (%p671) target = $region36
      $region35: #{dis_forward.7} parent=31 // pred_region
        _
      $region36: #{dis_forward.7} parent=31 // pred_fallthru
        _
    $region32: #{dis_forward.7} parent=5 // pred_fallthru
      _
    %p674 = scmp.le.s32.totalorder 2, %s9
    // Predicated region
    $region37: #{dis_forward.7} parent=5 // pred_check
      %p675 = pneg %p674
    $region38: #{dis_forward.7} parent=5 // pred_check_branch
      %677 = sbr.rel (%p675) target = $region40
    $region39: #{dis_forward.7} parent=5 // pred_region
      %s678 = ssub.s32 %s9, 2
      // Predicated region
      $region41: #{dis_forward.7} parent=39 // pred_check
        %p679 = pneg %p106
      $region42: #{dis_forward.7} parent=39 // pred_check_branch
        %681 = sbr.rel (%p679) target = $region44
      $region43: #{dis_forward.7} parent=39 // pred_region
        %p682 = scmp.lt.s32.totalorder %s15, 1
        %s683 = scalar_select %p682, %s15, 1
        %s684 = smul.addr %s683, 2
        %s685 = smul.addr %s684, 8
        %s686 = scalar_lea.vmem %s3, %s685
      $region44: #{dis_forward.7} parent=39 // pred_fallthru
        _
    $region40: #{dis_forward.7} parent=5 // pred_fallthru
      _
  $region6: #{dis_forward.7} parent=0 // loop_footer
    %s13 = sadd.s32 1, %s9
  $region7: #{dis_forward.7} parent=0 // loop_footer_branch
    %8 = sbr.rel target = $region3
  $region8: #{dis_forward.7} parent=0 // loop_exit
    _

</llo_original>
